<compile_context>
chip_gen: v5e
topology: v5e:2x2
jax: 0.10.0
libtpu: 0.0.40
codegen_flags: <defaults>
</compile_context>

<pallas_src>
from functools import partial

import jax
import jax.numpy as jnp
from jax.experimental import pallas as pl
from jax.experimental.pallas import tpu as pltpu


def _elo_attn_kernel(x_ref, elo_ref, gamma_ref, beta_ref, wqkv_ref, welo_ref,
                     wout_ref, bout_ref, out_ref, *, heads, dim_head, eps):
    """One batch element per grid step: LN + QKV + elo-add + attention + proj."""
    N = x_ref.shape[1]
    inner = heads * dim_head

    # ---- LayerNorm (PyTorch semantics: biased variance, eps inside sqrt) ----
    x = x_ref[0]                                           # (N, dim) f32
    mu = jnp.mean(x, axis=-1, keepdims=True)
    xc = x - mu
    var = jnp.mean(xc * xc, axis=-1, keepdims=True)
    xn = xc * jax.lax.rsqrt(var + eps) * gamma_ref[...] + beta_ref[...]

    # ---- fused QKV projection (single MXU matmul, K = dim) ----
    # The softmax scale is already folded into the q columns of wqkv / welo.
    qkv = jnp.dot(xn, wqkv_ref[...], preferred_element_type=jnp.float32)   # (N, 3*inner)
    eloq = jnp.dot(elo_ref[0], welo_ref[...],
                   preferred_element_type=jnp.float32)                     # (1, inner)

    # ---- per-head attention; output projection folded into the head loop ----
    acc = None
    for h in range(heads):                                 # static unroll, lane-aligned slices
        lo, hi = h * dim_head, (h + 1) * dim_head
        q_h = qkv[:, lo:hi] + eloq[:, lo:hi]               # (N, dh)  (elo broadcast over rows)
        k_h = qkv[:, inner + lo:inner + hi]                # (N, dh)
        v_h = qkv[:, 2 * inner + lo:2 * inner + hi]        # (N, dh)

        dots = jnp.einsum('nd,md->nm', q_h, k_h,
                          preferred_element_type=jnp.float32)              # (N, N)
        dots = dots - jnp.max(dots, axis=-1, keepdims=True)
        e = jnp.exp(dots)
        attn = e / jnp.sum(e, axis=-1, keepdims=True)
        # TODO(synk): attention dropout with p > 0 (training mode) not implemented;
        #             dropout=0.0 / eval mode is the identity.

        o_h = jnp.dot(attn, v_h, preferred_element_type=jnp.float32)       # (N, dh)
        p = jnp.dot(o_h, wout_ref[lo:hi, :],
                    preferred_element_type=jnp.float32)                    # (N, dim)
        acc = p if acc is None else acc + p

    y = acc + bout_ref[...]
    out_ref[0] = y.astype(out_ref.dtype)


def elo_aware_attention_forward(x, elo_emb, gamma, beta, w_qkv, w_elo, w_out,
                                b_out, *, heads, dim_head, eps=1e-5):
    """x: (B, N, dim) f32.  elo_emb: (B, elo_dim).  Weights are (in, out)."""
    B, N, dim = x.shape
    elo_dim = elo_emb.shape[-1]
    inner = heads * dim_head
    scale = dim_head ** -0.5

    # Fold the attention scale into the q-producing weights (trace-time, free).
    w_qkv_f = w_qkv.at[:, :inner].multiply(scale)
    w_elo_f = w_elo * scale

    elo3 = elo_emb.reshape(B, 1, elo_dim)

    kernel = partial(_elo_attn_kernel, heads=heads, dim_head=dim_head, eps=eps)
    return pl.pallas_call(
        kernel,
        out_shape=jax.ShapeDtypeStruct((B, N, dim), x.dtype),
        grid=(B,),
        in_specs=[
            pl.BlockSpec((1, N, dim), lambda b: (b, 0, 0)),        # x
            pl.BlockSpec((1, 1, elo_dim), lambda b: (b, 0, 0)),    # elo_emb
            pl.BlockSpec((1, dim), lambda b: (0, 0)),              # LN gamma
            pl.BlockSpec((1, dim), lambda b: (0, 0)),              # LN beta
            pl.BlockSpec((dim, 3 * inner), lambda b: (0, 0)),      # W_qkv (scale-folded)
            pl.BlockSpec((elo_dim, inner), lambda b: (0, 0)),      # W_elo (scale-folded)
            pl.BlockSpec((inner, dim), lambda b: (0, 0)),          # W_out
            pl.BlockSpec((1, dim), lambda b: (0, 0)),              # b_out
        ],
        out_specs=pl.BlockSpec((1, N, dim), lambda b: (b, 0, 0)),
        compiler_params=pltpu.CompilerParams(
            dimension_semantics=("parallel",)),                    # megacore-shard over batch
    )(x, elo3, gamma.reshape(1, dim), beta.reshape(1, dim),
      w_qkv_f, w_elo_f, w_out, b_out.reshape(1, dim))


def _ref_forward(x, elo_emb, gamma, beta, w_qkv, w_elo, w_out, b_out,
                 *, heads, dim_head, eps=1e-5):
    """Pure-JAX reference matching the PyTorch module (eval mode, dropout=0)."""
    B, N, dim = x.shape
    inner = heads * dim_head
    scale = dim_head ** -0.5

    mu = jnp.mean(x, axis=-1, keepdims=True)
    var = jnp.mean((x - mu) ** 2, axis=-1, keepdims=True)
    xn = (x - mu) / jnp.sqrt(var + eps) * gamma + beta

    qkv = xn @ w_qkv
    q, k, v = jnp.split(qkv, 3, axis=-1)

    def split_heads(t):                      # b n (h d) -> b h n d
        return t.reshape(B, N, heads, dim_head).transpose(0, 2, 1, 3)

    q, k, v = map(split_heads, (q, k, v))
    elo_eff = (elo_emb @ w_elo).reshape(B, heads, 1, dim_head)
    q = q + elo_eff

    dots = jnp.einsum('bhnd,bhmd->bhnm', q, k) * scale
    attn = jax.nn.softmax(dots, axis=-1)
    out = jnp.einsum('bhnm,bhmd->bhnd', attn, v)
    out = out.transpose(0, 2, 1, 3).reshape(B, N, inner)
    return out @ w_out + b_out


if __name__ == "__main__":
    key = jax.random.PRNGKey(0)
    # Small, lane-friendly shapes: dim and dim_head are 128 (full vreg lanes).
    B, N, dim = 2, 16, 128
    heads, dim_head, elo_dim = 4, 128, 64
    inner = heads * dim_head

    ks = jax.random.split(key, 8)
    x = jax.random.normal(ks[0], (B, N, dim), jnp.float32)
    elo = jax.random.normal(ks[1], (B, elo_dim), jnp.float32)
    gamma = 1.0 + 0.1 * jax.random.normal(ks[2], (dim,), jnp.float32)
    beta = 0.1 * jax.random.normal(ks[3], (dim,), jnp.float32)
    w_qkv = 0.1 * jax.random.normal(ks[4], (dim, 3 * inner), jnp.float32)
    w_elo = 0.1 * jax.random.normal(ks[5], (elo_dim, inner), jnp.float32)
    w_out = 0.1 * jax.random.normal(ks[6], (inner, dim), jnp.float32)
    b_out = 0.1 * jax.random.normal(ks[7], (dim,), jnp.float32)

    out = elo_aware_attention_forward(x, elo, gamma, beta, w_qkv, w_elo, w_out,
                                      b_out, heads=heads, dim_head=dim_head)
    out = jax.block_until_ready(out)

    ref = _ref_forward(x, elo, gamma, beta, w_qkv, w_elo, w_out, b_out,
                       heads=heads, dim_head=dim_head)
    err = float(jnp.max(jnp.abs(out - ref)))
    assert err < 1e-3, f"mismatch vs reference: max abs err = {err}"
    print("KERNEL_OK")
</pallas_src>

<mosaic_0001>
module attributes {stable_mosaic.version = 11 : i64} {
  func.func @_elo_attn_kernel(%arg0: i32, %arg1: memref<1x16x128xf32, #tpu.memory_space<vmem>>, %arg2: memref<1x1x64xf32, #tpu.memory_space<vmem>>, %arg3: memref<1x128xf32, #tpu.memory_space<vmem>>, %arg4: memref<1x128xf32, #tpu.memory_space<vmem>>, %arg5: memref<128x1536xf32, #tpu.memory_space<vmem>>, %arg6: memref<64x512xf32, #tpu.memory_space<vmem>>, %arg7: memref<512x128xf32, #tpu.memory_space<vmem>>, %arg8: memref<1x128xf32, #tpu.memory_space<vmem>>, %arg9: memref<1x16x128xf32, #tpu.memory_space<vmem>>) attributes {dimension_semantics = [#tpu.dimension_semantics<parallel>], iteration_bounds = array<i64: 2>, scalar_prefetch = 0 : i64, scratch_operands = 0 : i64, tpu.core_type = #tpu.core_type<tc>, window_params = [{transform_indices = @transform_0, window_bounds = array<i64: 1, 16, 128>}, {transform_indices = @transform_1, window_bounds = array<i64: 1, 1, 64>}, {pipeline_mode = #tpu.pipeline_mode<synchronous>, transform_indices = @transform_2, window_bounds = array<i64: 1, 128>}, {pipeline_mode = #tpu.pipeline_mode<synchronous>, transform_indices = @transform_3, window_bounds = array<i64: 1, 128>}, {pipeline_mode = #tpu.pipeline_mode<synchronous>, transform_indices = @transform_4, window_bounds = array<i64: 128, 1536>}, {pipeline_mode = #tpu.pipeline_mode<synchronous>, transform_indices = @transform_5, window_bounds = array<i64: 64, 512>}, {pipeline_mode = #tpu.pipeline_mode<synchronous>, transform_indices = @transform_6, window_bounds = array<i64: 512, 128>}, {pipeline_mode = #tpu.pipeline_mode<synchronous>, transform_indices = @transform_7, window_bounds = array<i64: 1, 128>}, {transform_indices = @transform_8, window_bounds = array<i64: 1, 16, 128>}]} {
    %c0 = arith.constant 0 : index
    %c0_0 = arith.constant 0 : index
    %c0_1 = arith.constant 0 : index
    %0 = vector.load %arg1[%c0, %c0_0, %c0_1] : memref<1x16x128xf32, #tpu.memory_space<vmem>>, vector<1x16x128xf32>
    %1 = vector.shape_cast %0 : vector<1x16x128xf32> to vector<16x128xf32>
    %cst = arith.constant dense<0.000000e+00> : vector<16xf32>
    %2 = vector.multi_reduction <add>, %1, %cst [1] : vector<16x128xf32> to vector<16xf32>
    %3 = vector.shape_cast %2 : vector<16xf32> to vector<16x1xf32>
    %cst_2 = arith.constant 1.280000e+02 : f32
    %4 = vector.broadcast %cst_2 : f32 to vector<16x1xf32>
    %5 = arith.divf %3, %4 : vector<16x1xf32>
    %6 = vector.broadcast %5 : vector<16x1xf32> to vector<16x128xf32>
    %7 = arith.subf %1, %6 : vector<16x128xf32>
    %8 = arith.mulf %7, %7 : vector<16x128xf32>
    %cst_3 = arith.constant dense<0.000000e+00> : vector<16xf32>
    %9 = vector.multi_reduction <add>, %8, %cst_3 [1] : vector<16x128xf32> to vector<16xf32>
    %10 = vector.shape_cast %9 : vector<16xf32> to vector<16x1xf32>
    %cst_4 = arith.constant 1.280000e+02 : f32
    %11 = vector.broadcast %cst_4 : f32 to vector<16x1xf32>
    %12 = arith.divf %10, %11 : vector<16x1xf32>
    %cst_5 = arith.constant 9.99999974E-6 : f32
    %13 = vector.broadcast %cst_5 : f32 to vector<16x1xf32>
    %14 = arith.addf %12, %13 : vector<16x1xf32>
    %15 = math.rsqrt %14 : vector<16x1xf32>
    %16 = vector.broadcast %15 : vector<16x1xf32> to vector<16x128xf32>
    %17 = arith.mulf %7, %16 : vector<16x128xf32>
    %c0_6 = arith.constant 0 : index
    %c0_7 = arith.constant 0 : index
    %18 = vector.load %arg3[%c0_6, %c0_7] : memref<1x128xf32, #tpu.memory_space<vmem>>, vector<1x128xf32>
    %19 = vector.broadcast %18 : vector<1x128xf32> to vector<16x128xf32>
    %20 = arith.mulf %17, %19 : vector<16x128xf32>
    %c0_8 = arith.constant 0 : index
    %c0_9 = arith.constant 0 : index
    %21 = vector.load %arg4[%c0_8, %c0_9] : memref<1x128xf32, #tpu.memory_space<vmem>>, vector<1x128xf32>
    %22 = vector.broadcast %21 : vector<1x128xf32> to vector<16x128xf32>
    %23 = arith.addf %20, %22 : vector<16x128xf32>
    %c0_10 = arith.constant 0 : index
    %c0_11 = arith.constant 0 : index
    %24 = vector.load %arg5[%c0_10, %c0_11] : memref<128x1536xf32, #tpu.memory_space<vmem>>, vector<128x1536xf32>
    %cst_12 = arith.constant dense<0.000000e+00> : vector<16x1536xf32>
    %25 = tpu.matmul %23, %24, %cst_12 {dimension_numbers = #tpu.dot_dimension_numbers<[1], [0], [0], [1], [0, 0, 1, 1], [], []>} : vector<16x128xf32>, vector<128x1536xf32>, vector<16x1536xf32> -> vector<16x1536xf32>
    %c0_13 = arith.constant 0 : index
    %c0_14 = arith.constant 0 : index
    %c0_15 = arith.constant 0 : index
    %26 = vector.load %arg2[%c0_13, %c0_14, %c0_15] : memref<1x1x64xf32, #tpu.memory_space<vmem>>, vector<1x1x64xf32>
    %27 = vector.shape_cast %26 : vector<1x1x64xf32> to vector<1x64xf32>
    %c0_16 = arith.constant 0 : index
    %c0_17 = arith.constant 0 : index
    %28 = vector.load %arg6[%c0_16, %c0_17] : memref<64x512xf32, #tpu.memory_space<vmem>>, vector<64x512xf32>
    %cst_18 = arith.constant dense<0.000000e+00> : vector<1x512xf32>
    %29 = tpu.matmul %27, %28, %cst_18 {dimension_numbers = #tpu.dot_dimension_numbers<[1], [0], [0], [1], [0, 0, 1, 1], [], []>} : vector<1x64xf32>, vector<64x512xf32>, vector<1x512xf32> -> vector<1x512xf32>
    %30 = vector.extract_strided_slice %25 {offsets = [0, 0], sizes = [16, 128], strides = [1, 1]} : vector<16x1536xf32> to vector<16x128xf32>
    %31 = vector.extract_strided_slice %29 {offsets = [0, 0], sizes = [1, 128], strides = [1, 1]} : vector<1x512xf32> to vector<1x128xf32>
    %32 = vector.broadcast %31 : vector<1x128xf32> to vector<16x128xf32>
    %33 = arith.addf %30, %32 : vector<16x128xf32>
    %34 = vector.extract_strided_slice %25 {offsets = [0, 512], sizes = [16, 128], strides = [1, 1]} : vector<16x1536xf32> to vector<16x128xf32>
    %35 = vector.extract_strided_slice %25 {offsets = [0, 1024], sizes = [16, 128], strides = [1, 1]} : vector<16x1536xf32> to vector<16x128xf32>
    "tpu.trace_start"() <{level = 10 : i32, message = "nd,md->nm"}> : () -> ()
    %cst_19 = arith.constant dense<0.000000e+00> : vector<16x16xf32>
    %36 = tpu.matmul %33, %34, %cst_19 {dimension_numbers = #tpu.dot_dimension_numbers<[1], [1], [0], [0], [0, 0, 1, 0], [], []>} : vector<16x128xf32>, vector<16x128xf32>, vector<16x16xf32> -> vector<16x16xf32>
    "tpu.trace_stop"() : () -> ()
    %cst_20 = arith.constant dense<0xFF800000> : vector<16xf32>
    %37 = vector.multi_reduction <maximumf>, %36, %cst_20 [1] : vector<16x16xf32> to vector<16xf32>
    %38 = vector.shape_cast %37 : vector<16xf32> to vector<16x1xf32>
    %39 = vector.broadcast %38 : vector<16x1xf32> to vector<16x16xf32>
    %40 = arith.subf %36, %39 : vector<16x16xf32>
    %41 = math.exp %40 : vector<16x16xf32>
    %cst_21 = arith.constant dense<0.000000e+00> : vector<16xf32>
    %42 = vector.multi_reduction <add>, %41, %cst_21 [1] : vector<16x16xf32> to vector<16xf32>
    %43 = vector.shape_cast %42 : vector<16xf32> to vector<16x1xf32>
    %44 = vector.broadcast %43 : vector<16x1xf32> to vector<16x16xf32>
    %45 = arith.divf %41, %44 : vector<16x16xf32>
    %cst_22 = arith.constant dense<0.000000e+00> : vector<16x128xf32>
    %46 = tpu.matmul %45, %35, %cst_22 {dimension_numbers = #tpu.dot_dimension_numbers<[1], [0], [0], [1], [0, 0, 1, 1], [], []>} : vector<16x16xf32>, vector<16x128xf32>, vector<16x128xf32> -> vector<16x128xf32>
    %c0_23 = arith.constant 0 : index
    %c0_24 = arith.constant 0 : index
    %47 = vector.load %arg7[%c0_23, %c0_24] : memref<512x128xf32, #tpu.memory_space<vmem>>, vector<128x128xf32>
    %cst_25 = arith.constant dense<0.000000e+00> : vector<16x128xf32>
    %48 = tpu.matmul %46, %47, %cst_25 {dimension_numbers = #tpu.dot_dimension_numbers<[1], [0], [0], [1], [0, 0, 1, 1], [], []>} : vector<16x128xf32>, vector<128x128xf32>, vector<16x128xf32> -> vector<16x128xf32>
    %49 = vector.extract_strided_slice %25 {offsets = [0, 128], sizes = [16, 128], strides = [1, 1]} : vector<16x1536xf32> to vector<16x128xf32>
    %50 = vector.extract_strided_slice %29 {offsets = [0, 128], sizes = [1, 128], strides = [1, 1]} : vector<1x512xf32> to vector<1x128xf32>
    %51 = vector.broadcast %50 : vector<1x128xf32> to vector<16x128xf32>
    %52 = arith.addf %49, %51 : vector<16x128xf32>
    %53 = vector.extract_strided_slice %25 {offsets = [0, 640], sizes = [16, 128], strides = [1, 1]} : vector<16x1536xf32> to vector<16x128xf32>
    %54 = vector.extract_strided_slice %25 {offsets = [0, 1152], sizes = [16, 128], strides = [1, 1]} : vector<16x1536xf32> to vector<16x128xf32>
    "tpu.trace_start"() <{level = 10 : i32, message = "nd,md->nm"}> : () -> ()
    %cst_26 = arith.constant dense<0.000000e+00> : vector<16x16xf32>
    %55 = tpu.matmul %52, %53, %cst_26 {dimension_numbers = #tpu.dot_dimension_numbers<[1], [1], [0], [0], [0, 0, 1, 0], [], []>} : vector<16x128xf32>, vector<16x128xf32>, vector<16x16xf32> -> vector<16x16xf32>
    "tpu.trace_stop"() : () -> ()
    %cst_27 = arith.constant dense<0xFF800000> : vector<16xf32>
    %56 = vector.multi_reduction <maximumf>, %55, %cst_27 [1] : vector<16x16xf32> to vector<16xf32>
    %57 = vector.shape_cast %56 : vector<16xf32> to vector<16x1xf32>
    %58 = vector.broadcast %57 : vector<16x1xf32> to vector<16x16xf32>
    %59 = arith.subf %55, %58 : vector<16x16xf32>
    %60 = math.exp %59 : vector<16x16xf32>
    %cst_28 = arith.constant dense<0.000000e+00> : vector<16xf32>
    %61 = vector.multi_reduction <add>, %60, %cst_28 [1] : vector<16x16xf32> to vector<16xf32>
    %62 = vector.shape_cast %61 : vector<16xf32> to vector<16x1xf32>
    %63 = vector.broadcast %62 : vector<16x1xf32> to vector<16x16xf32>
    %64 = arith.divf %60, %63 : vector<16x16xf32>
    %cst_29 = arith.constant dense<0.000000e+00> : vector<16x128xf32>
    %65 = tpu.matmul %64, %54, %cst_29 {dimension_numbers = #tpu.dot_dimension_numbers<[1], [0], [0], [1], [0, 0, 1, 1], [], []>} : vector<16x16xf32>, vector<16x128xf32>, vector<16x128xf32> -> vector<16x128xf32>
    %c128 = arith.constant 128 : index
    %c0_30 = arith.constant 0 : index
    %66 = vector.load %arg7[%c128, %c0_30] : memref<512x128xf32, #tpu.memory_space<vmem>>, vector<128x128xf32>
    %cst_31 = arith.constant dense<0.000000e+00> : vector<16x128xf32>
    %67 = tpu.matmul %65, %66, %cst_31 {dimension_numbers = #tpu.dot_dimension_numbers<[1], [0], [0], [1], [0, 0, 1, 1], [], []>} : vector<16x128xf32>, vector<128x128xf32>, vector<16x128xf32> -> vector<16x128xf32>
    %68 = arith.addf %48, %67 : vector<16x128xf32>
    %69 = vector.extract_strided_slice %25 {offsets = [0, 256], sizes = [16, 128], strides = [1, 1]} : vector<16x1536xf32> to vector<16x128xf32>
    %70 = vector.extract_strided_slice %29 {offsets = [0, 256], sizes = [1, 128], strides = [1, 1]} : vector<1x512xf32> to vector<1x128xf32>
    %71 = vector.broadcast %70 : vector<1x128xf32> to vector<16x128xf32>
    %72 = arith.addf %69, %71 : vector<16x128xf32>
    %73 = vector.extract_strided_slice %25 {offsets = [0, 768], sizes = [16, 128], strides = [1, 1]} : vector<16x1536xf32> to vector<16x128xf32>
    %74 = vector.extract_strided_slice %25 {offsets = [0, 1280], sizes = [16, 128], strides = [1, 1]} : vector<16x1536xf32> to vector<16x128xf32>
    "tpu.trace_start"() <{level = 10 : i32, message = "nd,md->nm"}> : () -> ()
    %cst_32 = arith.constant dense<0.000000e+00> : vector<16x16xf32>
    %75 = tpu.matmul %72, %73, %cst_32 {dimension_numbers = #tpu.dot_dimension_numbers<[1], [1], [0], [0], [0, 0, 1, 0], [], []>} : vector<16x128xf32>, vector<16x128xf32>, vector<16x16xf32> -> vector<16x16xf32>
    "tpu.trace_stop"() : () -> ()
    %cst_33 = arith.constant dense<0xFF800000> : vector<16xf32>
    %76 = vector.multi_reduction <maximumf>, %75, %cst_33 [1] : vector<16x16xf32> to vector<16xf32>
    %77 = vector.shape_cast %76 : vector<16xf32> to vector<16x1xf32>
    %78 = vector.broadcast %77 : vector<16x1xf32> to vector<16x16xf32>
    %79 = arith.subf %75, %78 : vector<16x16xf32>
    %80 = math.exp %79 : vector<16x16xf32>
    %cst_34 = arith.constant dense<0.000000e+00> : vector<16xf32>
    %81 = vector.multi_reduction <add>, %80, %cst_34 [1] : vector<16x16xf32> to vector<16xf32>
    %82 = vector.shape_cast %81 : vector<16xf32> to vector<16x1xf32>
    %83 = vector.broadcast %82 : vector<16x1xf32> to vector<16x16xf32>
    %84 = arith.divf %80, %83 : vector<16x16xf32>
    %cst_35 = arith.constant dense<0.000000e+00> : vector<16x128xf32>
    %85 = tpu.matmul %84, %74, %cst_35 {dimension_numbers = #tpu.dot_dimension_numbers<[1], [0], [0], [1], [0, 0, 1, 1], [], []>} : vector<16x16xf32>, vector<16x128xf32>, vector<16x128xf32> -> vector<16x128xf32>
    %c256 = arith.constant 256 : index
    %c0_36 = arith.constant 0 : index
    %86 = vector.load %arg7[%c256, %c0_36] : memref<512x128xf32, #tpu.memory_space<vmem>>, vector<128x128xf32>
    %cst_37 = arith.constant dense<0.000000e+00> : vector<16x128xf32>
    %87 = tpu.matmul %85, %86, %cst_37 {dimension_numbers = #tpu.dot_dimension_numbers<[1], [0], [0], [1], [0, 0, 1, 1], [], []>} : vector<16x128xf32>, vector<128x128xf32>, vector<16x128xf32> -> vector<16x128xf32>
    %88 = arith.addf %68, %87 : vector<16x128xf32>
    %89 = vector.extract_strided_slice %25 {offsets = [0, 384], sizes = [16, 128], strides = [1, 1]} : vector<16x1536xf32> to vector<16x128xf32>
    %90 = vector.extract_strided_slice %29 {offsets = [0, 384], sizes = [1, 128], strides = [1, 1]} : vector<1x512xf32> to vector<1x128xf32>
    %91 = vector.broadcast %90 : vector<1x128xf32> to vector<16x128xf32>
    %92 = arith.addf %89, %91 : vector<16x128xf32>
    %93 = vector.extract_strided_slice %25 {offsets = [0, 896], sizes = [16, 128], strides = [1, 1]} : vector<16x1536xf32> to vector<16x128xf32>
    %94 = vector.extract_strided_slice %25 {offsets = [0, 1408], sizes = [16, 128], strides = [1, 1]} : vector<16x1536xf32> to vector<16x128xf32>
    "tpu.trace_start"() <{level = 10 : i32, message = "nd,md->nm"}> : () -> ()
    %cst_38 = arith.constant dense<0.000000e+00> : vector<16x16xf32>
    %95 = tpu.matmul %92, %93, %cst_38 {dimension_numbers = #tpu.dot_dimension_numbers<[1], [1], [0], [0], [0, 0, 1, 0], [], []>} : vector<16x128xf32>, vector<16x128xf32>, vector<16x16xf32> -> vector<16x16xf32>
    "tpu.trace_stop"() : () -> ()
    %cst_39 = arith.constant dense<0xFF800000> : vector<16xf32>
    %96 = vector.multi_reduction <maximumf>, %95, %cst_39 [1] : vector<16x16xf32> to vector<16xf32>
    %97 = vector.shape_cast %96 : vector<16xf32> to vector<16x1xf32>
    %98 = vector.broadcast %97 : vector<16x1xf32> to vector<16x16xf32>
    %99 = arith.subf %95, %98 : vector<16x16xf32>
    %100 = math.exp %99 : vector<16x16xf32>
    %cst_40 = arith.constant dense<0.000000e+00> : vector<16xf32>
    %101 = vector.multi_reduction <add>, %100, %cst_40 [1] : vector<16x16xf32> to vector<16xf32>
    %102 = vector.shape_cast %101 : vector<16xf32> to vector<16x1xf32>
    %103 = vector.broadcast %102 : vector<16x1xf32> to vector<16x16xf32>
    %104 = arith.divf %100, %103 : vector<16x16xf32>
    %cst_41 = arith.constant dense<0.000000e+00> : vector<16x128xf32>
    %105 = tpu.matmul %104, %94, %cst_41 {dimension_numbers = #tpu.dot_dimension_numbers<[1], [0], [0], [1], [0, 0, 1, 1], [], []>} : vector<16x16xf32>, vector<16x128xf32>, vector<16x128xf32> -> vector<16x128xf32>
    %c384 = arith.constant 384 : index
    %c0_42 = arith.constant 0 : index
    %106 = vector.load %arg7[%c384, %c0_42] : memref<512x128xf32, #tpu.memory_space<vmem>>, vector<128x128xf32>
    %cst_43 = arith.constant dense<0.000000e+00> : vector<16x128xf32>
    %107 = tpu.matmul %105, %106, %cst_43 {dimension_numbers = #tpu.dot_dimension_numbers<[1], [0], [0], [1], [0, 0, 1, 1], [], []>} : vector<16x128xf32>, vector<128x128xf32>, vector<16x128xf32> -> vector<16x128xf32>
    %108 = arith.addf %88, %107 : vector<16x128xf32>
    %c0_44 = arith.constant 0 : index
    %c0_45 = arith.constant 0 : index
    %109 = vector.load %arg8[%c0_44, %c0_45] : memref<1x128xf32, #tpu.memory_space<vmem>>, vector<1x128xf32>
    %110 = vector.broadcast %109 : vector<1x128xf32> to vector<16x128xf32>
    %111 = arith.addf %108, %110 : vector<16x128xf32>
    %c0_46 = arith.constant 0 : index
    %c0_47 = arith.constant 0 : index
    %c0_48 = arith.constant 0 : index
    %112 = vector.load %arg9[%c0_46, %c0_47, %c0_48] : memref<1x16x128xf32, #tpu.memory_space<vmem>>, vector<1x16x128xf32>
    %113 = vector.shape_cast %112 : vector<1x16x128xf32> to vector<16x128xf32>
    %114 = vector.shape_cast %111 : vector<16x128xf32> to vector<1x16x128xf32>
    tpu.vector_store %arg9[%c0_46, %c0_47, %c0_48], %114 {strides = array<i32>} : memref<1x16x128xf32, #tpu.memory_space<vmem>>, vector<1x16x128xf32>,
    return
  }
  func.func @transform_0(%arg0: i32) -> (i32, i32, i32) {
    %c0_i32 = arith.constant 0 : i32
    %c0_i32_0 = arith.constant 0 : i32
    %c0_i32_1 = arith.constant 0 : i32
    return %arg0, %c0_i32, %c0_i32_0 : i32, i32, i32
  }
  func.func @transform_1(%arg0: i32) -> (i32, i32, i32) {
    %c0_i32 = arith.constant 0 : i32
    %c0_i32_0 = arith.constant 0 : i32
    %c0_i32_1 = arith.constant 0 : i32
    return %arg0, %c0_i32, %c0_i32_0 : i32, i32, i32
  }
  func.func @transform_2(%arg0: i32) -> (i32, i32) {
    %c0_i32 = arith.constant 0 : i32
    %c0_i32_0 = arith.constant 0 : i32
    %c0_i32_1 = arith.constant 0 : i32
    return %c0_i32, %c0_i32_0 : i32, i32
  }
  func.func @transform_3(%arg0: i32) -> (i32, i32) {
    %c0_i32 = arith.constant 0 : i32
    %c0_i32_0 = arith.constant 0 : i32
    %c0_i32_1 = arith.constant 0 : i32
    return %c0_i32, %c0_i32_0 : i32, i32
  }
  func.func @transform_4(%arg0: i32) -> (i32, i32) {
    %c0_i32 = arith.constant 0 : i32
    %c0_i32_0 = arith.constant 0 : i32
    %c0_i32_1 = arith.constant 0 : i32
    return %c0_i32, %c0_i32_0 : i32, i32
  }
  func.func @transform_5(%arg0: i32) -> (i32, i32) {
    %c0_i32 = arith.constant 0 : i32
    %c0_i32_0 = arith.constant 0 : i32
    %c0_i32_1 = arith.constant 0 : i32
    return %c0_i32, %c0_i32_0 : i32, i32
  }
  func.func @transform_6(%arg0: i32) -> (i32, i32) {
    %c0_i32 = arith.constant 0 : i32
    %c0_i32_0 = arith.constant 0 : i32
    %c0_i32_1 = arith.constant 0 : i32
    return %c0_i32, %c0_i32_0 : i32, i32
  }
  func.func @transform_7(%arg0: i32) -> (i32, i32) {
    %c0_i32 = arith.constant 0 : i32
    %c0_i32_0 = arith.constant 0 : i32
    %c0_i32_1 = arith.constant 0 : i32
    return %c0_i32, %c0_i32_0 : i32, i32
  }
  func.func @transform_8(%arg0: i32) -> (i32, i32, i32) {
    %c0_i32 = arith.constant 0 : i32
    %c0_i32_0 = arith.constant 0 : i32
    %c0_i32_1 = arith.constant 0 : i32
    return %arg0, %c0_i32, %c0_i32_0 : i32, i32, i32
  }
}

</mosaic_0001>

<llo_original>
// kernel: tpu_custom_call.1
$region0: #{tpu_custom_call.1}
  #allocation0 [shape = 'u32[]', space=smem, size = 0x4, offset = 0x4, fixed_abs, tag = 'smem constant byte address 0x4 - core index']
  #allocation1 [shape = 'u32[72,128]{1,0:T(1,128)}', space=vmem, size = 0x9000, scoped, tag = 'internal scratch']
  %s0 = inlined_call_operand.hbm [shape: f32[2,16,128], index: 0, kind: input, shape index: {}]
  %s1 = inlined_call_operand.hbm [shape: f32[2,1,64], index: 1, kind: input, shape index: {}]
  %s2 = inlined_call_operand.vmem [shape: f32[1,128], index: 2, kind: input, shape index: {}]
  %s3 = inlined_call_operand.vmem [shape: f32[1,128], index: 3, kind: input, shape index: {}]
  %s4 = inlined_call_operand.hbm [shape: f32[128,1536], index: 4, kind: input, shape index: {}]
  %s5 = inlined_call_operand.hbm [shape: f32[64,512], index: 5, kind: input, shape index: {}]
  %s6 = inlined_call_operand.hbm [shape: f32[512,128], index: 6, kind: input, shape index: {}]
  %s7 = inlined_call_operand.vmem [shape: f32[1,128], index: 7, kind: input, shape index: {}]
  %s8 = inlined_call_operand.hbm [shape: f32[2,16,128], index: 8, kind: output, shape index: {}]
  %s9 = sld [smem:[#allocation0]]
  $region85: #{tpu_custom_call.1} parent=0
    _
  %s11 = ssub.s32 1, %s9
  %s12 = scalar_select 0, %s11, %s9
  $region1: #{tpu_custom_call.1} parent=0
    #allocation2 [shape = 'u8[16384]{0}', space=vmem, size = 0x4000, scoped, tag = 'input window, operand 0']
    #allocation3 [shape = 's32[2]{0}', space=sflag, size = 0x8, scoped, tag = 'scoped memory for tpu_custom_call.1']
    #allocation4 [shape = 's32[2]{0}', space=sflag, size = 0x8, scoped, tag = 'scoped memory for tpu_custom_call.1']
    #allocation5 [shape = 'u8[1024]{0}', space=vmem, size = 0x400, scoped, tag = 'input window, operand 1']
    #allocation6 [shape = 's32[2]{0}', space=sflag, size = 0x8, scoped, tag = 'scoped memory for tpu_custom_call.1']
    #allocation7 [shape = 'u8[786432]{0}', space=vmem, size = 0xc0000, scoped, tag = 'input window, operand 4, single buffered']
    #allocation8 [shape = 'u8[131072]{0}', space=vmem, size = 0x20000, scoped, tag = 'input window, operand 5, single buffered']
    #allocation9 [shape = 's32[1]{0}', space=sflag, size = 0x4, scoped, tag = 'scoped memory for tpu_custom_call.1']
    #allocation10 [shape = 'u8[262144]{0}', space=vmem, size = 0x40000, scoped, tag = 'input window, operand 6, single buffered']
    #allocation11 [shape = 'u8[16384]{0}', space=vmem, size = 0x4000, scoped, tag = 'output window, operand 0']
    %13 = vsyncpa [#allocation3], 0
    %s14 = scalar_lea.sflag [#allocation3], 1
    %15 = vsyncpa %s14, 0
    %16 = vsyncpa [#allocation6], 0
    %s17 = scalar_lea.sflag [#allocation6], 1
    %18 = vsyncpa %s17, 0
    %19 = vsyncpa [#allocation9], 0
    %20 = vsyncpa [#allocation4], 0
    %s21 = scalar_lea.sflag [#allocation4], 1
    %22 = vsyncpa %s21, 0
    loop: start=0, step=1, limit=4
    $region2: #{tpu_custom_call.1} parent=1 // loop_pre_header
      _
    $region3: #{tpu_custom_call.1} parent=1 // loop_header
      %s24 = sphi 0, %s28
      %p25 = scmp.ge.s32.totalorder %s24, 4
      %s34 = sphi 0, %s36
      %s37 = sphi 0, %s34
      %s38 = sphi 0, %s37
      %s54 = sphi 0, %s38
      %s60 = sphi 0, %s62
      %s63 = sphi 0, %s60
      %s64 = sphi 0, %s63
      %s80 = sphi 0, %s64
      %s84 = sphi 0, %s84
      %s86 = sphi 0, %s84
      %s87 = sphi 0, %s86
      %s101 = sphi 0, %s87
      %s105 = sphi 0, %s105
      %s107 = sphi 0, %s105
      %s108 = sphi 0, %s107
      %s122 = sphi 0, %s108
      %s126 = sphi 0, %s126
      %s128 = sphi 0, %s126
      %s129 = sphi 0, %s128
      %s143 = sphi 0, %s129
      %s147 = sphi 0, %s147
      %s149 = sphi 0, %s147
      %s150 = sphi 0, %s149
      %s164 = sphi 0, %s150
      %s168 = sphi 0, %s168
      %s170 = sphi 0, %s168
      %s171 = sphi 0, %s170
      %s185 = sphi 0, %s171
      %s189 = sphi 0, %s189
      %s191 = sphi 0, %s189
      %s192 = sphi 0, %s191
      %s206 = sphi 0, %s192
      %s212 = sphi 0, %s214
      %s215 = sphi 0, %s212
      %s216 = sphi 0, %s215
      %s232 = sphi 0, %s216
    $region4: #{tpu_custom_call.1} parent=1 // loop_header_branch
      %27 = sbr.rel (%p25) target = $region8
    $region5: #{tpu_custom_call.1} parent=1 // loop_body
      %s29 = ssub.s32 %s24, 1
      %s30 = ssub.s32 %s24, 2
      %s31 = sadd.s32 %s24, 1
      %s32 = ssub.s32 %s24, %s31
      %p33 = scmp.eq.s32.totalorder %s32, 0
      %s35 = sadd.s32 %s34, 1
      %s36 = scalar_select %p33, %s34, %s35
      %p39 = pneg %p33
      %p40 = scmp.eq.s32.totalorder %s24, 1
      %p41 = por %p39, %p40
      %p42 = scmp.ne.s32.totalorder %s34, %s37
      %p43 = scmp.eq.s32.totalorder %s24, 0
      %p44 = por %p42, %p43
      %p45 = scmp.ne.s32.totalorder %s34, %s37
      %p46 = scmp.eq.s32.totalorder %s29, 1
      %p47 = por %p45, %p46
      %p48 = scmp.ne.s32.totalorder %s37, %s38
      %p49 = scmp.eq.s32.totalorder %s29, 0
      %p50 = por %p48, %p49
      %p51 = scmp.ne.s32.totalorder %s37, %s38
      %p52 = scmp.eq.s32.totalorder %s30, 1
      %p53 = por %p51, %p52
      %p55 = scmp.ne.s32.totalorder %s38, %s54
      %p56 = scmp.eq.s32.totalorder %s30, 0
      %p57 = por %p55, %p56
      %s58 = ssub.s32 %s24, %s31
      %p59 = scmp.eq.s32.totalorder %s58, 0
      %s61 = sadd.s32 %s60, 1
      %s62 = scalar_select %p59, %s60, %s61
      %p65 = pneg %p59
      %p66 = scmp.eq.s32.totalorder %s24, 1
      %p67 = por %p65, %p66
      %p68 = scmp.ne.s32.totalorder %s60, %s63
      %p69 = scmp.eq.s32.totalorder %s24, 0
      %p70 = por %p68, %p69
      %p71 = scmp.ne.s32.totalorder %s60, %s63
      %p72 = scmp.eq.s32.totalorder %s29, 1
      %p73 = por %p71, %p72
      %p74 = scmp.ne.s32.totalorder %s63, %s64
      %p75 = scmp.eq.s32.totalorder %s29, 0
      %p76 = por %p74, %p75
      %p77 = scmp.ne.s32.totalorder %s63, %s64
      %p78 = scmp.eq.s32.totalorder %s30, 1
      %p79 = por %p77, %p78
      %p81 = scmp.ne.s32.totalorder %s64, %s80
      %p82 = scmp.eq.s32.totalorder %s30, 0
      %p83 = por %p81, %p82
      %s85 = sadd.s32 %s84, 1
      %p88 = scmp.eq.s32.totalorder %s24, 1
      %p89 = scmp.ne.s32.totalorder %s84, %s86
      %p90 = scmp.eq.s32.totalorder %s24, 0
      %p91 = por %p89, %p90
      %p92 = scmp.ne.s32.totalorder %s84, %s86
      %p93 = scmp.eq.s32.totalorder %s29, 1
      %p94 = por %p92, %p93
      %p95 = scmp.ne.s32.totalorder %s86, %s87
      %p96 = scmp.eq.s32.totalorder %s29, 0
      %p97 = por %p95, %p96
      %p98 = scmp.ne.s32.totalorder %s86, %s87
      %p99 = scmp.eq.s32.totalorder %s30, 1
      %p100 = por %p98, %p99
      %p102 = scmp.ne.s32.totalorder %s87, %s101
      %p103 = scmp.eq.s32.totalorder %s30, 0
      %p104 = por %p102, %p103
      %s106 = sadd.s32 %s105, 1
      %p109 = scmp.eq.s32.totalorder %s24, 1
      %p110 = scmp.ne.s32.totalorder %s105, %s107
      %p111 = scmp.eq.s32.totalorder %s24, 0
      %p112 = por %p110, %p111
      %p113 = scmp.ne.s32.totalorder %s105, %s107
      %p114 = scmp.eq.s32.totalorder %s29, 1
      %p115 = por %p113, %p114
      %p116 = scmp.ne.s32.totalorder %s107, %s108
      %p117 = scmp.eq.s32.totalorder %s29, 0
      %p118 = por %p116, %p117
      %p119 = scmp.ne.s32.totalorder %s107, %s108
      %p120 = scmp.eq.s32.totalorder %s30, 1
      %p121 = por %p119, %p120
      %p123 = scmp.ne.s32.totalorder %s108, %s122
      %p124 = scmp.eq.s32.totalorder %s30, 0
      %p125 = por %p123, %p124
      %s127 = sadd.s32 %s126, 1
      %p130 = scmp.eq.s32.totalorder %s24, 1
      %p131 = scmp.ne.s32.totalorder %s126, %s128
      %p132 = scmp.eq.s32.totalorder %s24, 0
      %p133 = por %p131, %p132
      %p134 = scmp.ne.s32.totalorder %s126, %s128
      %p135 = scmp.eq.s32.totalorder %s29, 1
      %p136 = por %p134, %p135
      %p137 = scmp.ne.s32.totalorder %s128, %s129
      %p138 = scmp.eq.s32.totalorder %s29, 0
      %p139 = por %p137, %p138
      %p140 = scmp.ne.s32.totalorder %s128, %s129
      %p141 = scmp.eq.s32.totalorder %s30, 1
      %p142 = por %p140, %p141
      %p144 = scmp.ne.s32.totalorder %s129, %s143
      %p145 = scmp.eq.s32.totalorder %s30, 0
      %p146 = por %p144, %p145
      %s148 = sadd.s32 %s147, 1
      %p151 = scmp.eq.s32.totalorder %s24, 1
      %p152 = scmp.ne.s32.totalorder %s147, %s149
      %p153 = scmp.eq.s32.totalorder %s24, 0
      %p154 = por %p152, %p153
      %p155 = scmp.ne.s32.totalorder %s147, %s149
      %p156 = scmp.eq.s32.totalorder %s29, 1
      %p157 = por %p155, %p156
      %p158 = scmp.ne.s32.totalorder %s149, %s150
      %p159 = scmp.eq.s32.totalorder %s29, 0
      %p160 = por %p158, %p159
      %p161 = scmp.ne.s32.totalorder %s149, %s150
      %p162 = scmp.eq.s32.totalorder %s30, 1
      %p163 = por %p161, %p162
      %p165 = scmp.ne.s32.totalorder %s150, %s164
      %p166 = scmp.eq.s32.totalorder %s30, 0
      %p167 = por %p165, %p166
      %s169 = sadd.s32 %s168, 1
      %p172 = scmp.eq.s32.totalorder %s24, 1
      %p173 = scmp.ne.s32.totalorder %s168, %s170
      %p174 = scmp.eq.s32.totalorder %s24, 0
      %p175 = por %p173, %p174
      %p176 = scmp.ne.s32.totalorder %s168, %s170
      %p177 = scmp.eq.s32.totalorder %s29, 1
      %p178 = por %p176, %p177
      %p179 = scmp.ne.s32.totalorder %s170, %s171
      %p180 = scmp.eq.s32.totalorder %s29, 0
      %p181 = por %p179, %p180
      %p182 = scmp.ne.s32.totalorder %s170, %s171
      %p183 = scmp.eq.s32.totalorder %s30, 1
      %p184 = por %p182, %p183
      %p186 = scmp.ne.s32.totalorder %s171, %s185
      %p187 = scmp.eq.s32.totalorder %s30, 0
      %p188 = por %p186, %p187
      %s190 = sadd.s32 %s189, 1
      %p193 = scmp.eq.s32.totalorder %s24, 1
      %p194 = scmp.ne.s32.totalorder %s189, %s191
      %p195 = scmp.eq.s32.totalorder %s24, 0
      %p196 = por %p194, %p195
      %p197 = scmp.ne.s32.totalorder %s189, %s191
      %p198 = scmp.eq.s32.totalorder %s29, 1
      %p199 = por %p197, %p198
      %p200 = scmp.ne.s32.totalorder %s191, %s192
      %p201 = scmp.eq.s32.totalorder %s29, 0
      %p202 = por %p200, %p201
      %p203 = scmp.ne.s32.totalorder %s191, %s192
      %p204 = scmp.eq.s32.totalorder %s30, 1
      %p205 = por %p203, %p204
      %p207 = scmp.ne.s32.totalorder %s192, %s206
      %p208 = scmp.eq.s32.totalorder %s30, 0
      %p209 = por %p207, %p208
      %s210 = ssub.s32 %s24, %s31
      %p211 = scmp.eq.s32.totalorder %s210, 0
      %s213 = sadd.s32 %s212, 1
      %s214 = scalar_select %p211, %s212, %s213
      %p217 = pneg %p211
      %p218 = scmp.eq.s32.totalorder %s24, 1
      %p219 = por %p217, %p218
      %p220 = scmp.ne.s32.totalorder %s212, %s215
      %p221 = scmp.eq.s32.totalorder %s24, 0
      %p222 = por %p220, %p221
      %p223 = scmp.ne.s32.totalorder %s212, %s215
      %p224 = scmp.eq.s32.totalorder %s29, 1
      %p225 = por %p223, %p224
      %p226 = scmp.ne.s32.totalorder %s215, %s216
      %p227 = scmp.eq.s32.totalorder %s29, 0
      %p228 = por %p226, %p227
      %p229 = scmp.ne.s32.totalorder %s215, %s216
      %p230 = scmp.eq.s32.totalorder %s30, 1
      %p231 = por %p229, %p230
      %p233 = scmp.ne.s32.totalorder %s216, %s232
      %p234 = scmp.eq.s32.totalorder %s30, 0
      %p235 = por %p233, %p234
      %p236 = scmp.le.s32.totalorder 1, %s24
      %p237 = scmp.lt.s32.totalorder %s24, 3
      %p238 = pnand %p236, %p237
      %p239 = pneg %p238
      // Predicated region
      $region9: #{tpu_custom_call.1} parent=5 // pred_check
        _
      $region10: #{tpu_custom_call.1} parent=5 // pred_check_branch
        %241 = sbr.rel (%p238) target = $region12
      $region11: #{tpu_custom_call.1} parent=5 // pred_region
        %s242 = ssub.s32 %s24, 1
        // Predicated region
        $region13: #{tpu_custom_call.1} parent=11 // pred_check
          %p243 = pneg %p97
        $region14: #{tpu_custom_call.1} parent=11 // pred_check_branch
          %245 = sbr.rel (%p243) target = $region16
        $region15: #{tpu_custom_call.1} parent=11 // pred_region
          _
        $region16: #{tpu_custom_call.1} parent=11 // pred_fallthru
          _
        // Predicated region
        $region17: #{tpu_custom_call.1} parent=11 // pred_check
          %p246 = pneg %p118
        $region18: #{tpu_custom_call.1} parent=11 // pred_check_branch
          %248 = sbr.rel (%p246) target = $region20
        $region19: #{tpu_custom_call.1} parent=11 // pred_region
          _
        $region20: #{tpu_custom_call.1} parent=11 // pred_fallthru
          _
        // Predicated region
        $region21: #{tpu_custom_call.1} parent=11 // pred_check
          %p249 = pneg %p139
        $region22: #{tpu_custom_call.1} parent=11 // pred_check_branch
          %251 = sbr.rel (%p249) target = $region24
        $region23: #{tpu_custom_call.1} parent=11 // pred_region
          %253 = vsyncadd [#allocation6], 0
          %s254 = sshll.u32 %s4, 4
          %s255 = int_to_ptr.hbm [resolvable:$true] %s254
          %s256 = sshll.u32 [#allocation7], 4
          %s257 = int_to_ptr.vmem [resolvable:$true] %s256
          %262 = dma.hbm_to_vmem [thread:$0]  %s255, 24576, %s257, [#allocation6], 1536, 1536, 96
        $region24: #{tpu_custom_call.1} parent=11 // pred_fallthru
          _
        // Predicated region
        $region25: #{tpu_custom_call.1} parent=11 // pred_check
          %p263 = pneg %p160
        $region26: #{tpu_custom_call.1} parent=11 // pred_check_branch
          %265 = sbr.rel (%p263) target = $region28
        $region27: #{tpu_custom_call.1} parent=11 // pred_region
          %267 = vsyncadd [#allocation9], 0
          %s268 = sshll.u32 %s5, 4
          %s269 = int_to_ptr.hbm [resolvable:$true] %s268
          %s270 = sshll.u32 [#allocation8], 4
          %s271 = int_to_ptr.vmem [resolvable:$true] %s270
          %276 = dma.hbm_to_vmem [thread:$0]  %s269, 4096, %s271, [#allocation9], 512, 512, 32
        $region28: #{tpu_custom_call.1} parent=11 // pred_fallthru
          _
        // Predicated region
        $region29: #{tpu_custom_call.1} parent=11 // pred_check
          %p277 = pneg %p181
        $region30: #{tpu_custom_call.1} parent=11 // pred_check_branch
          %279 = sbr.rel (%p277) target = $region32
        $region31: #{tpu_custom_call.1} parent=11 // pred_region
          %281 = vsyncadd [#allocation9], 0
          %s282 = sshll.u32 %s6, 4
          %s283 = int_to_ptr.hbm [resolvable:$true] %s282
          %s284 = sshll.u32 [#allocation10], 4
          %s285 = int_to_ptr.vmem [resolvable:$true] %s284
          %290 = dma.hbm_to_vmem [thread:$0]  %s283, 8192, %s285, [#allocation9], 128, 128, 8
        $region32: #{tpu_custom_call.1} parent=11 // pred_fallthru
          _
        // Predicated region
        $region33: #{tpu_custom_call.1} parent=11 // pred_check
          %p291 = pneg %p202
        $region34: #{tpu_custom_call.1} parent=11 // pred_check_branch
          %293 = sbr.rel (%p291) target = $region36
        $region35: #{tpu_custom_call.1} parent=11 // pred_region
          _
        $region36: #{tpu_custom_call.1} parent=11 // pred_fallthru
          _
      $region12: #{tpu_custom_call.1} parent=5 // pred_fallthru
        _
      %p294 = scmp.lt.s32.totalorder %s24, 2
      // Predicated region
      $region37: #{tpu_custom_call.1} parent=5 // pred_check
        %p295 = pneg %p294
      $region38: #{tpu_custom_call.1} parent=5 // pred_check_branch
        %297 = sbr.rel (%p295) target = $region40
      $region39: #{tpu_custom_call.1} parent=5 // pred_region
        // Predicated region
        $region41: #{tpu_custom_call.1} parent=39 // pred_check
          %p298 = pneg %p44
        $region42: #{tpu_custom_call.1} parent=39 // pred_check_branch
          %300 = sbr.rel (%p298) target = $region44
        $region43: #{tpu_custom_call.1} parent=39 // pred_region
          %s301 = sand.u32 %s34, 1
          %s302 = scalar_lea.sflag [#allocation3], %s301
          %s303 = sand.u32 %s34, 1
          %s304 = smul.addr %s303, 16
          %s305 = scalar_lea.vmem [#allocation2], %s304
          %307 = vsyncadd %s302, 0
          %s308 = smul.addr %s24, 2
          %s309 = smul.addr %s308, 8
          %s310 = scalar_lea.hbm %s0, %s309
          %s311 = sshll.u32 %s310, 4
          %s312 = int_to_ptr.hbm [resolvable:$true] %s311
          %s313 = sshll.u32 %s305, 4
          %s314 = int_to_ptr.vmem [resolvable:$true] %s313
          %319 = dma.hbm_to_vmem [thread:$0]  %s312, 256, %s314, %s302, 128, 128, 8
        $region44: #{tpu_custom_call.1} parent=39 // pred_fallthru
          _
        // Predicated region
        $region45: #{tpu_custom_call.1} parent=39 // pred_check
          %p320 = pneg %p70
        $region46: #{tpu_custom_call.1} parent=39 // pred_check_branch
          %322 = sbr.rel (%p320) target = $region48
        $region47: #{tpu_custom_call.1} parent=39 // pred_region
          %s323 = sand.u32 %s24, 1
          %s324 = scalar_lea.sflag [#allocation6], %s323
          %s325 = sand.u32 %s60, 1
          %s326 = scalar_lea.vmem [#allocation5], %s325
          %328 = vsyncadd %s324, 0
          %s329 = scalar_lea.hbm %s1, %s24
          %s331 = sshll.u32 %s329, 4
          %s332 = int_to_ptr.hbm [resolvable:$true] %s331
          %s333 = sshll.u32 %s326, 4
          %s334 = int_to_ptr.vmem [resolvable:$true] %s333
          %336 = dma.hbm_to_vmem [thread:$0]  %s332, 16, %s334, %s324
        $region48: #{tpu_custom_call.1} parent=39 // pred_fallthru
          _
      $region40: #{tpu_custom_call.1} parent=5 // pred_fallthru
        _
      %p337 = scmp.le.s32.totalorder 1, %s24
      %p338 = scmp.lt.s32.totalorder %s24, 3
      %p339 = pnand %p337, %p338
      %p340 = pneg %p339
      // Predicated region
      $region49: #{tpu_custom_call.1} parent=5 // pred_check
        _
      $region50: #{tpu_custom_call.1} parent=5 // pred_check_branch
        %342 = sbr.rel (%p339) target = $region52
      $region51: #{tpu_custom_call.1} parent=5 // pred_region
        %s343 = ssub.s32 %s24, 1
        %s344 = sand.u32 %s37, 1
        %s345 = scalar_lea.sflag [#allocation3], %s344
        %s346 = sand.u32 %s37, 1
        %s347 = smul.addr %s346, 16
        %s348 = scalar_lea.vmem [#allocation2], %s347
        // Predicated region
        $region53: #{tpu_custom_call.1} parent=51 // pred_check
          %p349 = pneg %p50
        $region54: #{tpu_custom_call.1} parent=51 // pred_check_branch
          %351 = sbr.rel (%p349) target = $region56
        $region55: #{tpu_custom_call.1} parent=51 // pred_region
          %353 = dma.done %s345, 256
        $region56: #{tpu_custom_call.1} parent=51 // pred_fallthru
          _
        %s354 = sand.u32 %s29, 1
        %s355 = scalar_lea.sflag [#allocation6], %s354
        %s356 = sand.u32 %s63, 1
        %s357 = scalar_lea.vmem [#allocation5], %s356
        // Predicated region
        $region57: #{tpu_custom_call.1} parent=51 // pred_check
          %p358 = pneg %p76
        $region58: #{tpu_custom_call.1} parent=51 // pred_check_branch
          %360 = sbr.rel (%p358) target = $region60
        $region59: #{tpu_custom_call.1} parent=51 // pred_region
          %362 = dma.done %s355, 16
        $region60: #{tpu_custom_call.1} parent=51 // pred_fallthru
          _
        // Predicated region
        $region61: #{tpu_custom_call.1} parent=51 // pred_check
          %p363 = pneg %p139
        $region62: #{tpu_custom_call.1} parent=51 // pred_check_branch
          %365 = sbr.rel (%p363) target = $region64
        $region63: #{tpu_custom_call.1} parent=51 // pred_region
          %367 = dma.done [#allocation6], 24576
        $region64: #{tpu_custom_call.1} parent=51 // pred_fallthru
          _
        // Predicated region
        $region65: #{tpu_custom_call.1} parent=51 // pred_check
          %p368 = pneg %p160
        $region66: #{tpu_custom_call.1} parent=51 // pred_check_branch
          %370 = sbr.rel (%p368) target = $region68
        $region67: #{tpu_custom_call.1} parent=51 // pred_region
          %372 = dma.done [#allocation9], 4096
        $region68: #{tpu_custom_call.1} parent=51 // pred_fallthru
          _
        // Predicated region
        $region69: #{tpu_custom_call.1} parent=51 // pred_check
          %p373 = pneg %p181
        $region70: #{tpu_custom_call.1} parent=51 // pred_check_branch
          %375 = sbr.rel (%p373) target = $region72
        $region71: #{tpu_custom_call.1} parent=51 // pred_region
          %377 = dma.done [#allocation9], 8192
        $region72: #{tpu_custom_call.1} parent=51 // pred_fallthru
          _
        %s378 = sand.u32 %s37, 1
        %s379 = scalar_lea.sflag [#allocation3], %s378
        %s380 = sand.u32 %s37, 1
        %s381 = smul.addr %s380, 16
        %s382 = scalar_lea.vmem [#allocation2], %s381
        %p383 = pneg %p50
        %p384 = pneg %p47
        %s385 = sand.u32 %s29, 1
        %s386 = scalar_lea.sflag [#allocation6], %s385
        %s387 = sand.u32 %s63, 1
        %s388 = scalar_lea.vmem [#allocation5], %s387
        %p389 = pneg %p76
        %p390 = pneg %p73
        %p391 = pneg %p97
        %p392 = pneg %p94
        %p393 = pneg %p118
        %p394 = pneg %p115
        %p395 = pneg %p139
        %p396 = pneg %p136
        %p397 = pneg %p160
        %p398 = pneg %p157
        %p399 = pneg %p181
        %p400 = pneg %p178
        %p401 = pneg %p202
        %p402 = pneg %p199
        %p403 = pneg %p228
        %p404 = pneg %p225
        %s405 = sand.u32 %s215, 1
        %s406 = scalar_lea.sflag [#allocation4], %s405
        %s407 = sand.u32 %s215, 1
        %s408 = smul.addr %s407, 16
        %s409 = scalar_lea.vmem [#allocation11], %s408
        %v410 = vld [vmem:[%s348] sm:$0xff]
        %v411 = vld [vmem:[%s348 + $0x8] sm:$0xff]
        %412 = vadd.xlane.f32.xlu0 %v410
        %v413 = vpop.xlane.xlu0 %412
        %414 = vadd.xlane.f32.xlu0 %v411
        %v415 = vpop.xlane.xlu0 %414
        %v416 = vrcp.pop 128.0
        %v417 = vmul.f32 128.0, %v416
        %v418 = vsub.f32 1.0, %v417
        %v419 = vmul.f32 %v416, %v418
        %v420 = vadd.f32 %v416, %v419
        %vm421 = vweird.f32 %v416
        %v422 = vsel %vm421, %v416, %v420
        %v423 = vmul.f32 %v413, %v422
        %v424 = vmul.f32 %v415, %v422
        %v425 = vsub.f32 %v410, %v423
        %v426 = vsub.f32 %v411, %v424
        %v427 = vmul.f32 %v425, %v425
        %v428 = vmul.f32 %v426, %v426
        %429 = vadd.xlane.f32.xlu0 %v427
        %v430 = vpop.xlane.xlu0 %429
        %431 = vadd.xlane.f32.xlu0 %v428
        %v432 = vpop.xlane.xlu0 %431
        %v433 = vmul.f32 %v430, %v422
        %v434 = vmul.f32 %v432, %v422
        %v435 = vadd.f32 %v433, 1e-05
        %v436 = vadd.f32 %v434, 1e-05
        %v437 = vrsqrt.pop %v435
        %v438 = vmul.f32 %v437, %v435
        %v439 = vmul.f32 %v438, %v437
        %v440 = vmul.f32 0.5, %v439
        %v441 = vsub.f32 1.5, %v440
        %v442 = vmul.f32 %v437, %v441
        %vm443 = vweird.f32 %v435
        %vm444 = vweird.f32 %v437
        %vm445 = vmor %vm443, %vm444
        %v446 = vsel %vm445, %v437, %v442
        %v447 = vrsqrt.pop %v436
        %v448 = vmul.f32 %v447, %v436
        %v449 = vmul.f32 %v448, %v447
        %v450 = vmul.f32 0.5, %v449
        %v451 = vsub.f32 1.5, %v450
        %v452 = vmul.f32 %v447, %v451
        %vm453 = vweird.f32 %v436
        %vm454 = vweird.f32 %v447
        %vm455 = vmor %vm453, %vm454
        %v456 = vsel %vm455, %v447, %v452
        %v457 = vmul.f32 %v425, %v446
        %v458 = vmul.f32 %v426, %v456
        %v459 = vld [vmem:[%s2] sm:$0x1]
        %v461 = vperm.slane %v459, 0
        %v463 = vmul.f32 %v457, %v461
        %v464 = vmul.f32 %v458, %v461
        %v465 = vld [vmem:[%s3] sm:$0x1]
        %v467 = vperm.slane %v465, 0
        %v469 = vadd.f32 %v463, %v467
        %v470 = vadd.f32 %v464, %v467
        %v471 = vld [vmem:[#allocation7] sm:$0xff]
        %v472 = vld [vmem:[#allocation7 + $0x8] sm:$0xff]
        %v473 = vld [vmem:[#allocation7 + $0x10] sm:$0xff]
        %v474 = vld [vmem:[#allocation7 + $0x18] sm:$0xff]
        %v475 = vld [vmem:[#allocation7 + $0x20] sm:$0xff]
        %v476 = vld [vmem:[#allocation7 + $0x28] sm:$0xff]
        %v477 = vld [vmem:[#allocation7 + $0x30] sm:$0xff]
        %v478 = vld [vmem:[#allocation7 + $0x38] sm:$0xff]
        %v479 = vld [vmem:[#allocation7 + $0x40] sm:$0xff]
        %v480 = vld [vmem:[#allocation7 + $0x48] sm:$0xff]
        %v481 = vld [vmem:[#allocation7 + $0x50] sm:$0xff]
        %v482 = vld [vmem:[#allocation7 + $0x58] sm:$0xff]
        %v483 = vld [vmem:[#allocation7 + $0x60] sm:$0xff]
        %v484 = vld [vmem:[#allocation7 + $0x68] sm:$0xff]
        %v485 = vld [vmem:[#allocation7 + $0x70] sm:$0xff]
        %v486 = vld [vmem:[#allocation7 + $0x78] sm:$0xff]
        %v487 = vld [vmem:[#allocation7 + $0x80] sm:$0xff]
        %v488 = vld [vmem:[#allocation7 + $0x88] sm:$0xff]
        %v489 = vld [vmem:[#allocation7 + $0x90] sm:$0xff]
        %v490 = vld [vmem:[#allocation7 + $0x98] sm:$0xff]
        %v491 = vld [vmem:[#allocation7 + $0xa0] sm:$0xff]
        %v492 = vld [vmem:[#allocation7 + $0xa8] sm:$0xff]
        %v493 = vld [vmem:[#allocation7 + $0xb0] sm:$0xff]
        %v494 = vld [vmem:[#allocation7 + $0xb8] sm:$0xff]
        %v495 = vld [vmem:[#allocation7 + $0xc0] sm:$0xff]
        %v496 = vld [vmem:[#allocation7 + $0xc8] sm:$0xff]
        %v497 = vld [vmem:[#allocation7 + $0xd0] sm:$0xff]
        %v498 = vld [vmem:[#allocation7 + $0xd8] sm:$0xff]
        %v499 = vld [vmem:[#allocation7 + $0xe0] sm:$0xff]
        %v500 = vld [vmem:[#allocation7 + $0xe8] sm:$0xff]
        %v501 = vld [vmem:[#allocation7 + $0xf0] sm:$0xff]
        %v502 = vld [vmem:[#allocation7 + $0xf8] sm:$0xff]
        %v503 = vld [vmem:[#allocation7 + $0x100] sm:$0xff]
        %v504 = vld [vmem:[#allocation7 + $0x108] sm:$0xff]
        %v505 = vld [vmem:[#allocation7 + $0x110] sm:$0xff]
        %v506 = vld [vmem:[#allocation7 + $0x118] sm:$0xff]
        %v507 = vld [vmem:[#allocation7 + $0x120] sm:$0xff]
        %v508 = vld [vmem:[#allocation7 + $0x128] sm:$0xff]
        %v509 = vld [vmem:[#allocation7 + $0x130] sm:$0xff]
        %v510 = vld [vmem:[#allocation7 + $0x138] sm:$0xff]
        %v511 = vld [vmem:[#allocation7 + $0x140] sm:$0xff]
        %v512 = vld [vmem:[#allocation7 + $0x148] sm:$0xff]
        %v513 = vld [vmem:[#allocation7 + $0x150] sm:$0xff]
        %v514 = vld [vmem:[#allocation7 + $0x158] sm:$0xff]
        %v515 = vld [vmem:[#allocation7 + $0x160] sm:$0xff]
        %v516 = vld [vmem:[#allocation7 + $0x168] sm:$0xff]
        %v517 = vld [vmem:[#allocation7 + $0x170] sm:$0xff]
        %v518 = vld [vmem:[#allocation7 + $0x178] sm:$0xff]
        %v519 = vld [vmem:[#allocation7 + $0x180] sm:$0xff]
        %v520 = vld [vmem:[#allocation7 + $0x188] sm:$0xff]
        %v521 = vld [vmem:[#allocation7 + $0x190] sm:$0xff]
        %v522 = vld [vmem:[#allocation7 + $0x198] sm:$0xff]
        %v523 = vld [vmem:[#allocation7 + $0x1a0] sm:$0xff]
        %v524 = vld [vmem:[#allocation7 + $0x1a8] sm:$0xff]
        %v525 = vld [vmem:[#allocation7 + $0x1b0] sm:$0xff]
        %v526 = vld [vmem:[#allocation7 + $0x1b8] sm:$0xff]
        %v527 = vld [vmem:[#allocation7 + $0x1c0] sm:$0xff]
        %v528 = vld [vmem:[#allocation7 + $0x1c8] sm:$0xff]
        %v529 = vld [vmem:[#allocation7 + $0x1d0] sm:$0xff]
        %v530 = vld [vmem:[#allocation7 + $0x1d8] sm:$0xff]
        %v531 = vld [vmem:[#allocation7 + $0x1e0] sm:$0xff]
        %v532 = vld [vmem:[#allocation7 + $0x1e8] sm:$0xff]
        %v533 = vld [vmem:[#allocation7 + $0x1f0] sm:$0xff]
        %v534 = vld [vmem:[#allocation7 + $0x1f8] sm:$0xff]
        %v535 = vld [vmem:[#allocation7 + $0x200] sm:$0xff]
        %v536 = vld [vmem:[#allocation7 + $0x208] sm:$0xff]
        %v537 = vld [vmem:[#allocation7 + $0x210] sm:$0xff]
        %v538 = vld [vmem:[#allocation7 + $0x218] sm:$0xff]
        %v539 = vld [vmem:[#allocation7 + $0x220] sm:$0xff]
        %v540 = vld [vmem:[#allocation7 + $0x228] sm:$0xff]
        %v541 = vld [vmem:[#allocation7 + $0x230] sm:$0xff]
        %v542 = vld [vmem:[#allocation7 + $0x238] sm:$0xff]
        %v543 = vld [vmem:[#allocation7 + $0x240] sm:$0xff]
        %v544 = vld [vmem:[#allocation7 + $0x248] sm:$0xff]
        %v545 = vld [vmem:[#allocation7 + $0x250] sm:$0xff]
        %v546 = vld [vmem:[#allocation7 + $0x258] sm:$0xff]
        %v547 = vld [vmem:[#allocation7 + $0x260] sm:$0xff]
        %v548 = vld [vmem:[#allocation7 + $0x268] sm:$0xff]
        %v549 = vld [vmem:[#allocation7 + $0x270] sm:$0xff]
        %v550 = vld [vmem:[#allocation7 + $0x278] sm:$0xff]
        %v551 = vld [vmem:[#allocation7 + $0x280] sm:$0xff]
        %v552 = vld [vmem:[#allocation7 + $0x288] sm:$0xff]
        %v553 = vld [vmem:[#allocation7 + $0x290] sm:$0xff]
        %v554 = vld [vmem:[#allocation7 + $0x298] sm:$0xff]
        %v555 = vld [vmem:[#allocation7 + $0x2a0] sm:$0xff]
        %v556 = vld [vmem:[#allocation7 + $0x2a8] sm:$0xff]
        %v557 = vld [vmem:[#allocation7 + $0x2b0] sm:$0xff]
        %v558 = vld [vmem:[#allocation7 + $0x2b8] sm:$0xff]
        %v559 = vld [vmem:[#allocation7 + $0x2c0] sm:$0xff]
        %v560 = vld [vmem:[#allocation7 + $0x2c8] sm:$0xff]
        %v561 = vld [vmem:[#allocation7 + $0x2d0] sm:$0xff]
        %v562 = vld [vmem:[#allocation7 + $0x2d8] sm:$0xff]
        %v563 = vld [vmem:[#allocation7 + $0x2e0] sm:$0xff]
        %v564 = vld [vmem:[#allocation7 + $0x2e8] sm:$0xff]
        %v565 = vld [vmem:[#allocation7 + $0x2f0] sm:$0xff]
        %v566 = vld [vmem:[#allocation7 + $0x2f8] sm:$0xff]
        %v567 = vld [vmem:[#allocation7 + $0x300] sm:$0xff]
        %v568 = vld [vmem:[#allocation7 + $0x308] sm:$0xff]
        %v569 = vld [vmem:[#allocation7 + $0x310] sm:$0xff]
        %v570 = vld [vmem:[#allocation7 + $0x318] sm:$0xff]
        %v571 = vld [vmem:[#allocation7 + $0x320] sm:$0xff]
        %v572 = vld [vmem:[#allocation7 + $0x328] sm:$0xff]
        %v573 = vld [vmem:[#allocation7 + $0x330] sm:$0xff]
        %v574 = vld [vmem:[#allocation7 + $0x338] sm:$0xff]
        %v575 = vld [vmem:[#allocation7 + $0x340] sm:$0xff]
        %v576 = vld [vmem:[#allocation7 + $0x348] sm:$0xff]
        %v577 = vld [vmem:[#allocation7 + $0x350] sm:$0xff]
        %v578 = vld [vmem:[#allocation7 + $0x358] sm:$0xff]
        %v579 = vld [vmem:[#allocation7 + $0x360] sm:$0xff]
        %v580 = vld [vmem:[#allocation7 + $0x368] sm:$0xff]
        %v581 = vld [vmem:[#allocation7 + $0x370] sm:$0xff]
        %v582 = vld [vmem:[#allocation7 + $0x378] sm:$0xff]
        %v583 = vld [vmem:[#allocation7 + $0x380] sm:$0xff]
        %v584 = vld [vmem:[#allocation7 + $0x388] sm:$0xff]
        %v585 = vld [vmem:[#allocation7 + $0x390] sm:$0xff]
        %v586 = vld [vmem:[#allocation7 + $0x398] sm:$0xff]
        %v587 = vld [vmem:[#allocation7 + $0x3a0] sm:$0xff]
        %v588 = vld [vmem:[#allocation7 + $0x3a8] sm:$0xff]
        %v589 = vld [vmem:[#allocation7 + $0x3b0] sm:$0xff]
        %v590 = vld [vmem:[#allocation7 + $0x3b8] sm:$0xff]
        %v591 = vld [vmem:[#allocation7 + $0x3c0] sm:$0xff]
        %v592 = vld [vmem:[#allocation7 + $0x3c8] sm:$0xff]
        %v593 = vld [vmem:[#allocation7 + $0x3d0] sm:$0xff]
        %v594 = vld [vmem:[#allocation7 + $0x3d8] sm:$0xff]
        %v595 = vld [vmem:[#allocation7 + $0x3e0] sm:$0xff]
        %v596 = vld [vmem:[#allocation7 + $0x3e8] sm:$0xff]
        %v597 = vld [vmem:[#allocation7 + $0x3f0] sm:$0xff]
        %v598 = vld [vmem:[#allocation7 + $0x3f8] sm:$0xff]
        %v599 = vld [vmem:[#allocation7 + $0x400] sm:$0xff]
        %v600 = vld [vmem:[#allocation7 + $0x408] sm:$0xff]
        %v601 = vld [vmem:[#allocation7 + $0x410] sm:$0xff]
        %v602 = vld [vmem:[#allocation7 + $0x418] sm:$0xff]
        %v603 = vld [vmem:[#allocation7 + $0x420] sm:$0xff]
        %v604 = vld [vmem:[#allocation7 + $0x428] sm:$0xff]
        %v605 = vld [vmem:[#allocation7 + $0x430] sm:$0xff]
        %v606 = vld [vmem:[#allocation7 + $0x438] sm:$0xff]
        %v607 = vld [vmem:[#allocation7 + $0x440] sm:$0xff]
        %v608 = vld [vmem:[#allocation7 + $0x448] sm:$0xff]
        %v609 = vld [vmem:[#allocation7 + $0x450] sm:$0xff]
        %v610 = vld [vmem:[#allocation7 + $0x458] sm:$0xff]
        %v611 = vld [vmem:[#allocation7 + $0x460] sm:$0xff]
        %v612 = vld [vmem:[#allocation7 + $0x468] sm:$0xff]
        %v613 = vld [vmem:[#allocation7 + $0x470] sm:$0xff]
        %v614 = vld [vmem:[#allocation7 + $0x478] sm:$0xff]
        %v615 = vld [vmem:[#allocation7 + $0x480] sm:$0xff]
        %v616 = vld [vmem:[#allocation7 + $0x488] sm:$0xff]
        %v617 = vld [vmem:[#allocation7 + $0x490] sm:$0xff]
        %v618 = vld [vmem:[#allocation7 + $0x498] sm:$0xff]
        %v619 = vld [vmem:[#allocation7 + $0x4a0] sm:$0xff]
        %v620 = vld [vmem:[#allocation7 + $0x4a8] sm:$0xff]
        %v621 = vld [vmem:[#allocation7 + $0x4b0] sm:$0xff]
        %v622 = vld [vmem:[#allocation7 + $0x4b8] sm:$0xff]
        %v623 = vld [vmem:[#allocation7 + $0x4c0] sm:$0xff]
        %v624 = vld [vmem:[#allocation7 + $0x4c8] sm:$0xff]
        %v625 = vld [vmem:[#allocation7 + $0x4d0] sm:$0xff]
        %v626 = vld [vmem:[#allocation7 + $0x4d8] sm:$0xff]
        %v627 = vld [vmem:[#allocation7 + $0x4e0] sm:$0xff]
        %v628 = vld [vmem:[#allocation7 + $0x4e8] sm:$0xff]
        %v629 = vld [vmem:[#allocation7 + $0x4f0] sm:$0xff]
        %v630 = vld [vmem:[#allocation7 + $0x4f8] sm:$0xff]
        %v631 = vld [vmem:[#allocation7 + $0x500] sm:$0xff]
        %v632 = vld [vmem:[#allocation7 + $0x508] sm:$0xff]
        %v633 = vld [vmem:[#allocation7 + $0x510] sm:$0xff]
        %v634 = vld [vmem:[#allocation7 + $0x518] sm:$0xff]
        %v635 = vld [vmem:[#allocation7 + $0x520] sm:$0xff]
        %v636 = vld [vmem:[#allocation7 + $0x528] sm:$0xff]
        %v637 = vld [vmem:[#allocation7 + $0x530] sm:$0xff]
        %v638 = vld [vmem:[#allocation7 + $0x538] sm:$0xff]
        %v639 = vld [vmem:[#allocation7 + $0x540] sm:$0xff]
        %v640 = vld [vmem:[#allocation7 + $0x548] sm:$0xff]
        %v641 = vld [vmem:[#allocation7 + $0x550] sm:$0xff]
        %v642 = vld [vmem:[#allocation7 + $0x558] sm:$0xff]
        %v643 = vld [vmem:[#allocation7 + $0x560] sm:$0xff]
        %v644 = vld [vmem:[#allocation7 + $0x568] sm:$0xff]
        %v645 = vld [vmem:[#allocation7 + $0x570] sm:$0xff]
        %v646 = vld [vmem:[#allocation7 + $0x578] sm:$0xff]
        %v647 = vld [vmem:[#allocation7 + $0x580] sm:$0xff]
        %v648 = vld [vmem:[#allocation7 + $0x588] sm:$0xff]
        %v649 = vld [vmem:[#allocation7 + $0x590] sm:$0xff]
        %v650 = vld [vmem:[#allocation7 + $0x598] sm:$0xff]
        %v651 = vld [vmem:[#allocation7 + $0x5a0] sm:$0xff]
        %v652 = vld [vmem:[#allocation7 + $0x5a8] sm:$0xff]
        %v653 = vld [vmem:[#allocation7 + $0x5b0] sm:$0xff]
        %v654 = vld [vmem:[#allocation7 + $0x5b8] sm:$0xff]
        %v655 = vld [vmem:[#allocation7 + $0x5c0] sm:$0xff]
        %v656 = vld [vmem:[#allocation7 + $0x5c8] sm:$0xff]
        %v657 = vld [vmem:[#allocation7 + $0x5d0] sm:$0xff]
        %v658 = vld [vmem:[#allocation7 + $0x5d8] sm:$0xff]
        %v659 = vld [vmem:[#allocation7 + $0x5e0] sm:$0xff]
        %v660 = vld [vmem:[#allocation7 + $0x5e8] sm:$0xff]
        %v661 = vld [vmem:[#allocation7 + $0x5f0] sm:$0xff]
        %v662 = vld [vmem:[#allocation7 + $0x5f8] sm:$0xff]
        %663 = vmatpush.msra.mxu0 %v651
        %664 = vmatpush.msra.mxu0 %v639
        %665 = vmatpush.msra.mxu0 %v627
        %666 = vmatpush.msra.mxu0 %v615
        %667 = vmatpush.msra.mxu0 %v603
        %668 = vmatpush.msra.mxu0 %v591
        %669 = vmatpush.msra.mxu0 %v579
        %670 = vmatpush.msra.mxu0 %v567
        %671 = vmatpush.msra.mxu0 %v555
        %672 = vmatpush.msra.mxu0 %v543
        %673 = vmatpush.msra.mxu0 %v531
        %674 = vmatpush.msra.mxu0 %v519
        %675 = vmatpush.msra.mxu0 %v507
        %676 = vmatpush.msra.mxu0 %v495
        %677 = vmatpush.msra.mxu0 %v483
        %678 = vmatpush.msra.mxu0 %v471
        %679 = vmatmul.f32.gmra.mxu0 %v469
        %v680 = vpop.f32.mrf.mxu0
        %v681 = vadd.f32 0.0, %v680
        %682 = vmatmul.f32.gmra.mxu0 %v470
        %v683 = vpop.f32.mrf.mxu0
        %v684 = vadd.f32 0.0, %v683
        %685 = vdwg.mxu0
        %686 = vmatpush.msra.mxu0 %v652
        %687 = vmatpush.msra.mxu0 %v640
        %688 = vmatpush.msra.mxu0 %v628
        %689 = vmatpush.msra.mxu0 %v616
        %690 = vmatpush.msra.mxu0 %v604
        %691 = vmatpush.msra.mxu0 %v592
        %692 = vmatpush.msra.mxu0 %v580
        %693 = vmatpush.msra.mxu0 %v568
        %694 = vmatpush.msra.mxu0 %v556
        %695 = vmatpush.msra.mxu0 %v544
        %696 = vmatpush.msra.mxu0 %v532
        %697 = vmatpush.msra.mxu0 %v520
        %698 = vmatpush.msra.mxu0 %v508
        %699 = vmatpush.msra.mxu0 %v496
        %700 = vmatpush.msra.mxu0 %v484
        %701 = vmatpush.msra.mxu0 %v472
        %702 = vmatmul.f32.gmra.mxu0 %v469
        %v703 = vpop.f32.mrf.mxu0
        %v704 = vadd.f32 0.0, %v703
        %705 = vmatmul.f32.gmra.mxu0 %v470
        %v706 = vpop.f32.mrf.mxu0
        %v707 = vadd.f32 0.0, %v706
        %708 = vdwg.mxu0
        %709 = vmatpush.msra.mxu0 %v653
        %710 = vmatpush.msra.mxu0 %v641
        %711 = vmatpush.msra.mxu0 %v629
        %712 = vmatpush.msra.mxu0 %v617
        %713 = vmatpush.msra.mxu0 %v605
        %714 = vmatpush.msra.mxu0 %v593
        %715 = vmatpush.msra.mxu0 %v581
        %716 = vmatpush.msra.mxu0 %v569
        %717 = vmatpush.msra.mxu0 %v557
        %718 = vmatpush.msra.mxu0 %v545
        %719 = vmatpush.msra.mxu0 %v533
        %720 = vmatpush.msra.mxu0 %v521
        %721 = vmatpush.msra.mxu0 %v509
        %722 = vmatpush.msra.mxu0 %v497
        %723 = vmatpush.msra.mxu0 %v485
        %724 = vmatpush.msra.mxu0 %v473
        %725 = vmatmul.f32.gmra.mxu0 %v469
        %v726 = vpop.f32.mrf.mxu0
        %v727 = vadd.f32 0.0, %v726
        %728 = vmatmul.f32.gmra.mxu0 %v470
        %v729 = vpop.f32.mrf.mxu0
        %v730 = vadd.f32 0.0, %v729
        %731 = vdwg.mxu0
        %732 = vmatpush.msra.mxu0 %v654
        %733 = vmatpush.msra.mxu0 %v642
        %734 = vmatpush.msra.mxu0 %v630
        %735 = vmatpush.msra.mxu0 %v618
        %736 = vmatpush.msra.mxu0 %v606
        %737 = vmatpush.msra.mxu0 %v594
        %738 = vmatpush.msra.mxu0 %v582
        %739 = vmatpush.msra.mxu0 %v570
        %740 = vmatpush.msra.mxu0 %v558
        %741 = vmatpush.msra.mxu0 %v546
        %742 = vmatpush.msra.mxu0 %v534
        %743 = vmatpush.msra.mxu0 %v522
        %744 = vmatpush.msra.mxu0 %v510
        %745 = vmatpush.msra.mxu0 %v498
        %746 = vmatpush.msra.mxu0 %v486
        %747 = vmatpush.msra.mxu0 %v474
        %748 = vmatmul.f32.gmra.mxu0 %v469
        %v749 = vpop.f32.mrf.mxu0
        %v750 = vadd.f32 0.0, %v749
        %751 = vmatmul.f32.gmra.mxu0 %v470
        %v752 = vpop.f32.mrf.mxu0
        %v753 = vadd.f32 0.0, %v752
        %754 = vdwg.mxu0
        %755 = vmatpush.msra.mxu0 %v655
        %756 = vmatpush.msra.mxu0 %v643
        %757 = vmatpush.msra.mxu0 %v631
        %758 = vmatpush.msra.mxu0 %v619
        %759 = vmatpush.msra.mxu0 %v607
        %760 = vmatpush.msra.mxu0 %v595
        %761 = vmatpush.msra.mxu0 %v583
        %762 = vmatpush.msra.mxu0 %v571
        %763 = vmatpush.msra.mxu0 %v559
        %764 = vmatpush.msra.mxu0 %v547
        %765 = vmatpush.msra.mxu0 %v535
        %766 = vmatpush.msra.mxu0 %v523
        %767 = vmatpush.msra.mxu0 %v511
        %768 = vmatpush.msra.mxu0 %v499
        %769 = vmatpush.msra.mxu0 %v487
        %770 = vmatpush.msra.mxu0 %v475
        %771 = vmatmul.f32.gmra.mxu0 %v469
        %v772 = vpop.f32.mrf.mxu0
        %v773 = vadd.f32 0.0, %v772
        %774 = vmatmul.f32.gmra.mxu0 %v470
        %v775 = vpop.f32.mrf.mxu0
        %v776 = vadd.f32 0.0, %v775
        %777 = vdwg.mxu0
        %778 = vmatpush.msra.mxu0 %v656
        %779 = vmatpush.msra.mxu0 %v644
        %780 = vmatpush.msra.mxu0 %v632
        %781 = vmatpush.msra.mxu0 %v620
        %782 = vmatpush.msra.mxu0 %v608
        %783 = vmatpush.msra.mxu0 %v596
        %784 = vmatpush.msra.mxu0 %v584
        %785 = vmatpush.msra.mxu0 %v572
        %786 = vmatpush.msra.mxu0 %v560
        %787 = vmatpush.msra.mxu0 %v548
        %788 = vmatpush.msra.mxu0 %v536
        %789 = vmatpush.msra.mxu0 %v524
        %790 = vmatpush.msra.mxu0 %v512
        %791 = vmatpush.msra.mxu0 %v500
        %792 = vmatpush.msra.mxu0 %v488
        %793 = vmatpush.msra.mxu0 %v476
        %794 = vmatmul.f32.gmra.mxu0 %v469
        %v795 = vpop.f32.mrf.mxu0
        %v796 = vadd.f32 0.0, %v795
        %797 = vmatmul.f32.gmra.mxu0 %v470
        %v798 = vpop.f32.mrf.mxu0
        %v799 = vadd.f32 0.0, %v798
        %800 = vdwg.mxu0
        %801 = vmatpush.msra.mxu0 %v657
        %802 = vmatpush.msra.mxu0 %v645
        %803 = vmatpush.msra.mxu0 %v633
        %804 = vmatpush.msra.mxu0 %v621
        %805 = vmatpush.msra.mxu0 %v609
        %806 = vmatpush.msra.mxu0 %v597
        %807 = vmatpush.msra.mxu0 %v585
        %808 = vmatpush.msra.mxu0 %v573
        %809 = vmatpush.msra.mxu0 %v561
        %810 = vmatpush.msra.mxu0 %v549
        %811 = vmatpush.msra.mxu0 %v537
        %812 = vmatpush.msra.mxu0 %v525
        %813 = vmatpush.msra.mxu0 %v513
        %814 = vmatpush.msra.mxu0 %v501
        %815 = vmatpush.msra.mxu0 %v489
        %816 = vmatpush.msra.mxu0 %v477
        %817 = vmatmul.f32.gmra.mxu0 %v469
        %v818 = vpop.f32.mrf.mxu0
        %v819 = vadd.f32 0.0, %v818
        %820 = vmatmul.f32.gmra.mxu0 %v470
        %v821 = vpop.f32.mrf.mxu0
        %v822 = vadd.f32 0.0, %v821
        %823 = vdwg.mxu0
        %824 = vmatpush.msra.mxu0 %v658
        %825 = vmatpush.msra.mxu0 %v646
        %826 = vmatpush.msra.mxu0 %v634
        %827 = vmatpush.msra.mxu0 %v622
        %828 = vmatpush.msra.mxu0 %v610
        %829 = vmatpush.msra.mxu0 %v598
        %830 = vmatpush.msra.mxu0 %v586
        %831 = vmatpush.msra.mxu0 %v574
        %832 = vmatpush.msra.mxu0 %v562
        %833 = vmatpush.msra.mxu0 %v550
        %834 = vmatpush.msra.mxu0 %v538
        %835 = vmatpush.msra.mxu0 %v526
        %836 = vmatpush.msra.mxu0 %v514
        %837 = vmatpush.msra.mxu0 %v502
        %838 = vmatpush.msra.mxu0 %v490
        %839 = vmatpush.msra.mxu0 %v478
        %840 = vmatmul.f32.gmra.mxu0 %v469
        %v841 = vpop.f32.mrf.mxu0
        %v842 = vadd.f32 0.0, %v841
        %843 = vmatmul.f32.gmra.mxu0 %v470
        %v844 = vpop.f32.mrf.mxu0
        %v845 = vadd.f32 0.0, %v844
        %846 = vdwg.mxu0
        %847 = vmatpush.msra.mxu0 %v659
        %848 = vmatpush.msra.mxu0 %v647
        %849 = vmatpush.msra.mxu0 %v635
        %850 = vmatpush.msra.mxu0 %v623
        %851 = vmatpush.msra.mxu0 %v611
        %852 = vmatpush.msra.mxu0 %v599
        %853 = vmatpush.msra.mxu0 %v587
        %854 = vmatpush.msra.mxu0 %v575
        %855 = vmatpush.msra.mxu0 %v563
        %856 = vmatpush.msra.mxu0 %v551
        %857 = vmatpush.msra.mxu0 %v539
        %858 = vmatpush.msra.mxu0 %v527
        %859 = vmatpush.msra.mxu0 %v515
        %860 = vmatpush.msra.mxu0 %v503
        %861 = vmatpush.msra.mxu0 %v491
        %862 = vmatpush.msra.mxu0 %v479
        %863 = vmatmul.f32.gmra.mxu0 %v469
        %v864 = vpop.f32.mrf.mxu0
        %v865 = vadd.f32 0.0, %v864
        %866 = vmatmul.f32.gmra.mxu0 %v470
        %v867 = vpop.f32.mrf.mxu0
        %v868 = vadd.f32 0.0, %v867
        %869 = vdwg.mxu0
        %870 = vmatpush.msra.mxu0 %v660
        %871 = vmatpush.msra.mxu0 %v648
        %872 = vmatpush.msra.mxu0 %v636
        %873 = vmatpush.msra.mxu0 %v624
        %874 = vmatpush.msra.mxu0 %v612
        %875 = vmatpush.msra.mxu0 %v600
        %876 = vmatpush.msra.mxu0 %v588
        %877 = vmatpush.msra.mxu0 %v576
        %878 = vmatpush.msra.mxu0 %v564
        %879 = vmatpush.msra.mxu0 %v552
        %880 = vmatpush.msra.mxu0 %v540
        %881 = vmatpush.msra.mxu0 %v528
        %882 = vmatpush.msra.mxu0 %v516
        %883 = vmatpush.msra.mxu0 %v504
        %884 = vmatpush.msra.mxu0 %v492
        %885 = vmatpush.msra.mxu0 %v480
        %886 = vmatmul.f32.gmra.mxu0 %v469
        %v887 = vpop.f32.mrf.mxu0
        %v888 = vadd.f32 0.0, %v887
        %889 = vmatmul.f32.gmra.mxu0 %v470
        %v890 = vpop.f32.mrf.mxu0
        %v891 = vadd.f32 0.0, %v890
        %892 = vdwg.mxu0
        %893 = vmatpush.msra.mxu0 %v661
        %894 = vmatpush.msra.mxu0 %v649
        %895 = vmatpush.msra.mxu0 %v637
        %896 = vmatpush.msra.mxu0 %v625
        %897 = vmatpush.msra.mxu0 %v613
        %898 = vmatpush.msra.mxu0 %v601
        %899 = vmatpush.msra.mxu0 %v589
        %900 = vmatpush.msra.mxu0 %v577
        %901 = vmatpush.msra.mxu0 %v565
        %902 = vmatpush.msra.mxu0 %v553
        %903 = vmatpush.msra.mxu0 %v541
        %904 = vmatpush.msra.mxu0 %v529
        %905 = vmatpush.msra.mxu0 %v517
        %906 = vmatpush.msra.mxu0 %v505
        %907 = vmatpush.msra.mxu0 %v493
        %908 = vmatpush.msra.mxu0 %v481
        %909 = vmatmul.f32.gmra.mxu0 %v469
        %v910 = vpop.f32.mrf.mxu0
        %v911 = vadd.f32 0.0, %v910
        %912 = vmatmul.f32.gmra.mxu0 %v470
        %v913 = vpop.f32.mrf.mxu0
        %v914 = vadd.f32 0.0, %v913
        %915 = vdwg.mxu0
        %916 = vmatpush.msra.mxu0 %v662
        %917 = vmatpush.msra.mxu0 %v650
        %918 = vmatpush.msra.mxu0 %v638
        %919 = vmatpush.msra.mxu0 %v626
        %920 = vmatpush.msra.mxu0 %v614
        %921 = vmatpush.msra.mxu0 %v602
        %922 = vmatpush.msra.mxu0 %v590
        %923 = vmatpush.msra.mxu0 %v578
        %924 = vmatpush.msra.mxu0 %v566
        %925 = vmatpush.msra.mxu0 %v554
        %926 = vmatpush.msra.mxu0 %v542
        %927 = vmatpush.msra.mxu0 %v530
        %928 = vmatpush.msra.mxu0 %v518
        %929 = vmatpush.msra.mxu0 %v506
        %930 = vmatpush.msra.mxu0 %v494
        %931 = vmatpush.msra.mxu0 %v482
        %932 = vmatmul.f32.gmra.mxu0 %v469
        %v933 = vpop.f32.mrf.mxu0
        %v934 = vadd.f32 0.0, %v933
        %935 = vmatmul.f32.gmra.mxu0 %v470
        %v936 = vpop.f32.mrf.mxu0
        %v937 = vadd.f32 0.0, %v936
        %938 = vdwg.mxu0
        %v939 = vld [vmem:[%s357] sm:$0x1]
        %v940 = vld [vmem:[#allocation8] sm:$0xff]
        %v941 = vld [vmem:[#allocation8 + $0x8] sm:$0xff]
        %v942 = vld [vmem:[#allocation8 + $0x10] sm:$0xff]
        %v943 = vld [vmem:[#allocation8 + $0x18] sm:$0xff]
        %v944 = vld [vmem:[#allocation8 + $0x20] sm:$0xff]
        %v945 = vld [vmem:[#allocation8 + $0x28] sm:$0xff]
        %v946 = vld [vmem:[#allocation8 + $0x30] sm:$0xff]
        %v947 = vld [vmem:[#allocation8 + $0x38] sm:$0xff]
        %v948 = vld [vmem:[#allocation8 + $0x40] sm:$0xff]
        %v949 = vld [vmem:[#allocation8 + $0x48] sm:$0xff]
        %v950 = vld [vmem:[#allocation8 + $0x50] sm:$0xff]
        %v951 = vld [vmem:[#allocation8 + $0x58] sm:$0xff]
        %v952 = vld [vmem:[#allocation8 + $0x60] sm:$0xff]
        %v953 = vld [vmem:[#allocation8 + $0x68] sm:$0xff]
        %v954 = vld [vmem:[#allocation8 + $0x70] sm:$0xff]
        %v955 = vld [vmem:[#allocation8 + $0x78] sm:$0xff]
        %v956 = vld [vmem:[#allocation8 + $0x80] sm:$0xff]
        %v957 = vld [vmem:[#allocation8 + $0x88] sm:$0xff]
        %v958 = vld [vmem:[#allocation8 + $0x90] sm:$0xff]
        %v959 = vld [vmem:[#allocation8 + $0x98] sm:$0xff]
        %v960 = vld [vmem:[#allocation8 + $0xa0] sm:$0xff]
        %v961 = vld [vmem:[#allocation8 + $0xa8] sm:$0xff]
        %v962 = vld [vmem:[#allocation8 + $0xb0] sm:$0xff]
        %v963 = vld [vmem:[#allocation8 + $0xb8] sm:$0xff]
        %v964 = vld [vmem:[#allocation8 + $0xc0] sm:$0xff]
        %v965 = vld [vmem:[#allocation8 + $0xc8] sm:$0xff]
        %v966 = vld [vmem:[#allocation8 + $0xd0] sm:$0xff]
        %v967 = vld [vmem:[#allocation8 + $0xd8] sm:$0xff]
        %v968 = vld [vmem:[#allocation8 + $0xe0] sm:$0xff]
        %v969 = vld [vmem:[#allocation8 + $0xe8] sm:$0xff]
        %v970 = vld [vmem:[#allocation8 + $0xf0] sm:$0xff]
        %v971 = vld [vmem:[#allocation8 + $0xf8] sm:$0xff]
        %vm972 = vcmask 523264
        %v974 = vsel %vm972, %v939, 0
        %976 = vmatpush.msra.mxu0 0.0
        %977 = vmatpush.msra.mxu0 0.0
        %978 = vmatpush.msra.mxu0 0.0
        %979 = vmatpush.msra.mxu0 0.0
        %980 = vmatpush.msra.mxu0 0.0
        %981 = vmatpush.msra.mxu0 0.0
        %982 = vmatpush.msra.mxu0 0.0
        %983 = vmatpush.msra.mxu0 0.0
        %984 = vmatpush.msra.mxu0 %v968
        %985 = vmatpush.msra.mxu0 %v964
        %986 = vmatpush.msra.mxu0 %v960
        %987 = vmatpush.msra.mxu0 %v956
        %988 = vmatpush.msra.mxu0 %v952
        %989 = vmatpush.msra.mxu0 %v948
        %990 = vmatpush.msra.mxu0 %v944
        %991 = vmatpush.msra.mxu0 %v940
        %992 = vmatmul.f32.gmra.mxu0 %v974
        %v993 = vpop.f32.mrf.mxu0
        %v994 = vadd.f32 0.0, %v993
        %995 = vdwg.mxu0
        %996 = vmatpush.msra.mxu0 0.0
        %997 = vmatpush.msra.mxu0 0.0
        %998 = vmatpush.msra.mxu0 0.0
        %999 = vmatpush.msra.mxu0 0.0
        %1000 = vmatpush.msra.mxu0 0.0
        %1001 = vmatpush.msra.mxu0 0.0
        %1002 = vmatpush.msra.mxu0 0.0
        %1003 = vmatpush.msra.mxu0 0.0
        %1004 = vmatpush.msra.mxu0 %v969
        %1005 = vmatpush.msra.mxu0 %v965
        %1006 = vmatpush.msra.mxu0 %v961
        %1007 = vmatpush.msra.mxu0 %v957
        %1008 = vmatpush.msra.mxu0 %v953
        %1009 = vmatpush.msra.mxu0 %v949
        %1010 = vmatpush.msra.mxu0 %v945
        %1011 = vmatpush.msra.mxu0 %v941
        %1012 = vmatmul.f32.gmra.mxu0 %v974
        %v1013 = vpop.f32.mrf.mxu0
        %v1014 = vadd.f32 0.0, %v1013
        %1015 = vdwg.mxu0
        %1016 = vmatpush.msra.mxu0 0.0
        %1017 = vmatpush.msra.mxu0 0.0
        %1018 = vmatpush.msra.mxu0 0.0
        %1019 = vmatpush.msra.mxu0 0.0
        %1020 = vmatpush.msra.mxu0 0.0
        %1021 = vmatpush.msra.mxu0 0.0
        %1022 = vmatpush.msra.mxu0 0.0
        %1023 = vmatpush.msra.mxu0 0.0
        %1024 = vmatpush.msra.mxu0 %v970
        %1025 = vmatpush.msra.mxu0 %v966
        %1026 = vmatpush.msra.mxu0 %v962
        %1027 = vmatpush.msra.mxu0 %v958
        %1028 = vmatpush.msra.mxu0 %v954
        %1029 = vmatpush.msra.mxu0 %v950
        %1030 = vmatpush.msra.mxu0 %v946
        %1031 = vmatpush.msra.mxu0 %v942
        %1032 = vmatmul.f32.gmra.mxu0 %v974
        %v1033 = vpop.f32.mrf.mxu0
        %v1034 = vadd.f32 0.0, %v1033
        %1035 = vdwg.mxu0
        %1036 = vmatpush.msra.mxu0 0.0
        %1037 = vmatpush.msra.mxu0 0.0
        %1038 = vmatpush.msra.mxu0 0.0
        %1039 = vmatpush.msra.mxu0 0.0
        %1040 = vmatpush.msra.mxu0 0.0
        %1041 = vmatpush.msra.mxu0 0.0
        %1042 = vmatpush.msra.mxu0 0.0
        %1043 = vmatpush.msra.mxu0 0.0
        %1044 = vmatpush.msra.mxu0 %v971
        %1045 = vmatpush.msra.mxu0 %v967
        %1046 = vmatpush.msra.mxu0 %v963
        %1047 = vmatpush.msra.mxu0 %v959
        %1048 = vmatpush.msra.mxu0 %v955
        %1049 = vmatpush.msra.mxu0 %v951
        %1050 = vmatpush.msra.mxu0 %v947
        %1051 = vmatpush.msra.mxu0 %v943
        %1052 = vmatmul.f32.gmra.mxu0 %v974
        %v1053 = vpop.f32.mrf.mxu0
        %v1054 = vadd.f32 0.0, %v1053
        %1055 = vdwg.mxu0
        %v1056 = vperm.slane %v994, 0
        %v1057 = vadd.f32 %v681, %v1056
        %v1058 = vadd.f32 %v684, %v1056
        %1059 = vmatpush.xpose.msra.mxu0 0.0
        %1060 = vmatpush.xpose.msra.mxu0 0.0
        %1061 = vmatpush.xpose.msra.mxu0 0.0
        %1062 = vmatpush.xpose.msra.mxu0 0.0
        %1063 = vmatpush.xpose.msra.mxu0 0.0
        %1064 = vmatpush.xpose.msra.mxu0 0.0
        %1065 = vmatpush.xpose.msra.mxu0 0.0
        %1066 = vmatpush.xpose.msra.mxu0 0.0
        %1067 = vmatpush.xpose.msra.mxu0 0.0
        %1068 = vmatpush.xpose.msra.mxu0 0.0
        %1069 = vmatpush.xpose.msra.mxu0 0.0
        %1070 = vmatpush.xpose.msra.mxu0 0.0
        %1071 = vmatpush.xpose.msra.mxu0 0.0
        %1072 = vmatpush.xpose.msra.mxu0 0.0
        %1073 = vmatpush.xpose.msra.mxu0 %v776
        %1074 = vmatpush.xpose.msra.mxu0 %v773
        %1075 = vmatmul.f32.gmra.mxu0 %v1057
        %v1076 = vpop.f32.mrf.mxu0
        %v1077 = vadd.f32 0.0, %v1076
        %1078 = vmatmul.f32.gmra.mxu0 %v1058
        %v1079 = vpop.f32.mrf.mxu0
        %v1080 = vadd.f32 0.0, %v1079
        %1081 = vdwg.mxu0
        %vm1082 = vcmask 130048
        %v1083 = vsel %vm1082, %v1077, -inf
        %1084 = vmax.xlane.f32.xlu0 %v1083
        %v1085 = vpop.xlane.xlu0 %1084
        %v1086 = vsel %vm1082, %v1080, -inf
        %1087 = vmax.xlane.f32.xlu0 %v1086
        %v1088 = vpop.xlane.xlu0 %1087
        %v1089 = vsub.f32 %v1077, %v1085
        %v1090 = vsub.f32 %v1080, %v1088
        %v1091 = vmul.f32 %v1089, 1.442695
        %v1092 = vpow.pop %v1091
        %v1093 = vmul.f32 %v1090, 1.442695
        %v1094 = vpow.pop %v1093
        %v1095 = vsel %vm1082, %v1092, 0.0
        %1096 = vadd.xlane.f32.xlu0 %v1095
        %v1097 = vpop.xlane.xlu0 %1096
        %v1098 = vsel %vm1082, %v1094, 0.0
        %1099 = vadd.xlane.f32.xlu0 %v1098
        %v1100 = vpop.xlane.xlu0 %1099
        %v1101 = vrcp.pop %v1097
        %v1102 = vmul.f32 %v1097, %v1101
        %v1103 = vsub.f32 1.0, %v1102
        %v1104 = vmul.f32 %v1101, %v1103
        %v1105 = vadd.f32 %v1101, %v1104
        %vm1106 = vweird.f32 %v1097
        %vm1107 = vweird.f32 %v1101
        %vm1108 = vmor %vm1106, %vm1107
        %v1109 = vsel %vm1108, %v1101, %v1105
        %v1110 = vand.u32 2147483647, %v1097
        %vm1111 = vcmp.eq.f32.partialorder %v1110, 8.507059e+37
        %v1112 = vand.u32 %v1097, 2147483648
        %v1113 = vor.u32 1.1754944e-38, %v1112
        %v1114 = vsel %vm1111, %v1113, %v1109
        %v1115 = vmul.f32 %v1092, %v1114
        %v1116 = vrcp.pop %v1100
        %v1117 = vmul.f32 %v1100, %v1116
        %v1118 = vsub.f32 1.0, %v1117
        %v1119 = vmul.f32 %v1116, %v1118
        %v1120 = vadd.f32 %v1116, %v1119
        %vm1121 = vweird.f32 %v1100
        %vm1122 = vweird.f32 %v1116
        %vm1123 = vmor %vm1121, %vm1122
        %v1124 = vsel %vm1123, %v1116, %v1120
        %v1125 = vand.u32 2147483647, %v1100
        %vm1126 = vcmp.eq.f32.partialorder %v1125, 8.507059e+37
        %v1127 = vand.u32 %v1100, 2147483648
        %v1128 = vor.u32 1.1754944e-38, %v1127
        %v1129 = vsel %vm1126, %v1128, %v1124
        %v1130 = vmul.f32 %v1094, %v1129
        %v1132 = vsel %vm1082, %v1115, 0
        %v1135 = vsel %vm1082, %v1130, 0
        %1137 = vmatpush.msra.mxu0 0.0
        %1138 = vmatpush.msra.mxu0 0.0
        %1139 = vmatpush.msra.mxu0 0.0
        %1140 = vmatpush.msra.mxu0 0.0
        %1141 = vmatpush.msra.mxu0 0.0
        %1142 = vmatpush.msra.mxu0 0.0
        %1143 = vmatpush.msra.mxu0 0.0
        %1144 = vmatpush.msra.mxu0 0.0
        %1145 = vmatpush.msra.mxu0 0.0
        %1146 = vmatpush.msra.mxu0 0.0
        %1147 = vmatpush.msra.mxu0 0.0
        %1148 = vmatpush.msra.mxu0 0.0
        %1149 = vmatpush.msra.mxu0 0.0
        %1150 = vmatpush.msra.mxu0 0.0
        %1151 = vmatpush.msra.mxu0 %v868
        %1152 = vmatpush.msra.mxu0 %v865
        %1153 = vmatmul.f32.gmra.mxu0 %v1132
        %v1154 = vpop.f32.mrf.mxu0
        %v1155 = vadd.f32 0.0, %v1154
        %1156 = vmatmul.f32.gmra.mxu0 %v1135
        %v1157 = vpop.f32.mrf.mxu0
        %v1158 = vadd.f32 0.0, %v1157
        %1159 = vdwg.mxu0
        %v1160 = vld [vmem:[#allocation10] sm:$0xff]
        %v1161 = vld [vmem:[#allocation10 + $0x8] sm:$0xff]
        %v1162 = vld [vmem:[#allocation10 + $0x10] sm:$0xff]
        %v1163 = vld [vmem:[#allocation10 + $0x18] sm:$0xff]
        %v1164 = vld [vmem:[#allocation10 + $0x20] sm:$0xff]
        %v1165 = vld [vmem:[#allocation10 + $0x28] sm:$0xff]
        %v1166 = vld [vmem:[#allocation10 + $0x30] sm:$0xff]
        %v1167 = vld [vmem:[#allocation10 + $0x38] sm:$0xff]
        %v1168 = vld [vmem:[#allocation10 + $0x40] sm:$0xff]
        %v1169 = vld [vmem:[#allocation10 + $0x48] sm:$0xff]
        %v1170 = vld [vmem:[#allocation10 + $0x50] sm:$0xff]
        %v1171 = vld [vmem:[#allocation10 + $0x58] sm:$0xff]
        %v1172 = vld [vmem:[#allocation10 + $0x60] sm:$0xff]
        %v1173 = vld [vmem:[#allocation10 + $0x68] sm:$0xff]
        %v1174 = vld [vmem:[#allocation10 + $0x70] sm:$0xff]
        %v1175 = vld [vmem:[#allocation10 + $0x78] sm:$0xff]
        %v1176 = vperm.slane %v1014, 0
        %v1177 = vadd.f32 %v704, %v1176
        %v1178 = vadd.f32 %v707, %v1176
        %1179 = vmatpush.xpose.msra.mxu0 0.0
        %1180 = vmatpush.xpose.msra.mxu0 0.0
        %1181 = vmatpush.xpose.msra.mxu0 0.0
        %1182 = vmatpush.xpose.msra.mxu0 0.0
        %1183 = vmatpush.xpose.msra.mxu0 0.0
        %1184 = vmatpush.xpose.msra.mxu0 0.0
        %1185 = vmatpush.xpose.msra.mxu0 0.0
        %1186 = vmatpush.xpose.msra.mxu0 0.0
        %1187 = vmatpush.xpose.msra.mxu0 0.0
        %1188 = vmatpush.xpose.msra.mxu0 0.0
        %1189 = vmatpush.xpose.msra.mxu0 0.0
        %1190 = vmatpush.xpose.msra.mxu0 0.0
        %1191 = vmatpush.xpose.msra.mxu0 0.0
        %1192 = vmatpush.xpose.msra.mxu0 0.0
        %1193 = vmatpush.xpose.msra.mxu0 %v799
        %1194 = vmatpush.xpose.msra.mxu0 %v796
        %1195 = vmatmul.f32.gmra.mxu0 %v1177
        %v1196 = vpop.f32.mrf.mxu0
        %v1197 = vadd.f32 0.0, %v1196
        %1198 = vmatmul.f32.gmra.mxu0 %v1178
        %v1199 = vpop.f32.mrf.mxu0
        %v1200 = vadd.f32 0.0, %v1199
        %1201 = vdwg.mxu0
        %v1202 = vsel %vm1082, %v1197, -inf
        %1203 = vmax.xlane.f32.xlu0 %v1202
        %v1204 = vpop.xlane.xlu0 %1203
        %v1205 = vsel %vm1082, %v1200, -inf
        %1206 = vmax.xlane.f32.xlu0 %v1205
        %v1207 = vpop.xlane.xlu0 %1206
        %v1208 = vsub.f32 %v1197, %v1204
        %v1209 = vsub.f32 %v1200, %v1207
        %v1210 = vmul.f32 %v1208, 1.442695
        %v1211 = vpow.pop %v1210
        %v1212 = vmul.f32 %v1209, 1.442695
        %v1213 = vpow.pop %v1212
        %v1214 = vsel %vm1082, %v1211, 0.0
        %1215 = vadd.xlane.f32.xlu0 %v1214
        %v1216 = vpop.xlane.xlu0 %1215
        %v1217 = vsel %vm1082, %v1213, 0.0
        %1218 = vadd.xlane.f32.xlu0 %v1217
        %v1219 = vpop.xlane.xlu0 %1218
        %v1220 = vrcp.pop %v1216
        %v1221 = vmul.f32 %v1216, %v1220
        %v1222 = vsub.f32 1.0, %v1221
        %v1223 = vmul.f32 %v1220, %v1222
        %v1224 = vadd.f32 %v1220, %v1223
        %vm1225 = vweird.f32 %v1216
        %vm1226 = vweird.f32 %v1220
        %vm1227 = vmor %vm1225, %vm1226
        %v1228 = vsel %vm1227, %v1220, %v1224
        %v1229 = vand.u32 2147483647, %v1216
        %vm1230 = vcmp.eq.f32.partialorder %v1229, 8.507059e+37
        %v1231 = vand.u32 %v1216, 2147483648
        %v1232 = vor.u32 1.1754944e-38, %v1231
        %v1233 = vsel %vm1230, %v1232, %v1228
        %v1234 = vmul.f32 %v1211, %v1233
        %v1235 = vrcp.pop %v1219
        %v1236 = vmul.f32 %v1219, %v1235
        %v1237 = vsub.f32 1.0, %v1236
        %v1238 = vmul.f32 %v1235, %v1237
        %v1239 = vadd.f32 %v1235, %v1238
        %vm1240 = vweird.f32 %v1219
        %vm1241 = vweird.f32 %v1235
        %vm1242 = vmor %vm1240, %vm1241
        %v1243 = vsel %vm1242, %v1235, %v1239
        %v1244 = vand.u32 2147483647, %v1219
        %vm1245 = vcmp.eq.f32.partialorder %v1244, 8.507059e+37
        %v1246 = vand.u32 %v1219, 2147483648
        %v1247 = vor.u32 1.1754944e-38, %v1246
        %v1248 = vsel %vm1245, %v1247, %v1243
        %v1249 = vmul.f32 %v1213, %v1248
        %v1251 = vsel %vm1082, %v1234, 0
        %v1254 = vsel %vm1082, %v1249, 0
        %1256 = vmatpush.msra.mxu0 0.0
        %1257 = vmatpush.msra.mxu0 0.0
        %1258 = vmatpush.msra.mxu0 0.0
        %1259 = vmatpush.msra.mxu0 0.0
        %1260 = vmatpush.msra.mxu0 0.0
        %1261 = vmatpush.msra.mxu0 0.0
        %1262 = vmatpush.msra.mxu0 0.0
        %1263 = vmatpush.msra.mxu0 0.0
        %1264 = vmatpush.msra.mxu0 0.0
        %1265 = vmatpush.msra.mxu0 0.0
        %1266 = vmatpush.msra.mxu0 0.0
        %1267 = vmatpush.msra.mxu0 0.0
        %1268 = vmatpush.msra.mxu0 0.0
        %1269 = vmatpush.msra.mxu0 0.0
        %1270 = vmatpush.msra.mxu0 %v891
        %1271 = vmatpush.msra.mxu0 %v888
        %1272 = vmatmul.f32.gmra.mxu0 %v1251
        %v1273 = vpop.f32.mrf.mxu0
        %v1274 = vadd.f32 0.0, %v1273
        %1275 = vmatmul.f32.gmra.mxu0 %v1254
        %v1276 = vpop.f32.mrf.mxu0
        %v1277 = vadd.f32 0.0, %v1276
        %1278 = vdwg.mxu0
        %v1279 = vld [vmem:[#allocation10 + $0x80] sm:$0xff]
        %v1280 = vld [vmem:[#allocation10 + $0x88] sm:$0xff]
        %v1281 = vld [vmem:[#allocation10 + $0x90] sm:$0xff]
        %v1282 = vld [vmem:[#allocation10 + $0x98] sm:$0xff]
        %v1283 = vld [vmem:[#allocation10 + $0xa0] sm:$0xff]
        %v1284 = vld [vmem:[#allocation10 + $0xa8] sm:$0xff]
        %v1285 = vld [vmem:[#allocation10 + $0xb0] sm:$0xff]
        %v1286 = vld [vmem:[#allocation10 + $0xb8] sm:$0xff]
        %v1287 = vld [vmem:[#allocation10 + $0xc0] sm:$0xff]
        %v1288 = vld [vmem:[#allocation10 + $0xc8] sm:$0xff]
        %v1289 = vld [vmem:[#allocation10 + $0xd0] sm:$0xff]
        %v1290 = vld [vmem:[#allocation10 + $0xd8] sm:$0xff]
        %v1291 = vld [vmem:[#allocation10 + $0xe0] sm:$0xff]
        %v1292 = vld [vmem:[#allocation10 + $0xe8] sm:$0xff]
        %v1293 = vld [vmem:[#allocation10 + $0xf0] sm:$0xff]
        %v1294 = vld [vmem:[#allocation10 + $0xf8] sm:$0xff]
        %1295 = vmatpush.msra.mxu0 %v1294
        %1296 = vmatpush.msra.mxu0 %v1293
        %1297 = vmatpush.msra.mxu0 %v1292
        %1298 = vmatpush.msra.mxu0 %v1291
        %1299 = vmatpush.msra.mxu0 %v1290
        %1300 = vmatpush.msra.mxu0 %v1289
        %1301 = vmatpush.msra.mxu0 %v1288
        %1302 = vmatpush.msra.mxu0 %v1287
        %1303 = vmatpush.msra.mxu0 %v1286
        %1304 = vmatpush.msra.mxu0 %v1285
        %1305 = vmatpush.msra.mxu0 %v1284
        %1306 = vmatpush.msra.mxu0 %v1283
        %1307 = vmatpush.msra.mxu0 %v1282
        %1308 = vmatpush.msra.mxu0 %v1281
        %1309 = vmatpush.msra.mxu0 %v1280
        %1310 = vmatpush.msra.mxu0 %v1279
        %1311 = vmatmul.f32.gmra.mxu0 %v1274
        %v1312 = vpop.f32.mrf.mxu0
        %v1313 = vadd.f32 0.0, %v1312
        %1314 = vmatmul.f32.gmra.mxu0 %v1277
        %v1315 = vpop.f32.mrf.mxu0
        %v1316 = vadd.f32 0.0, %v1315
        %1317 = vdwg.mxu0
        %1318 = vmatpush.msra.mxu0 %v1175
        %1319 = vmatpush.msra.mxu0 %v1174
        %1320 = vmatpush.msra.mxu0 %v1173
        %1321 = vmatpush.msra.mxu0 %v1172
        %1322 = vmatpush.msra.mxu0 %v1171
        %1323 = vmatpush.msra.mxu0 %v1170
        %1324 = vmatpush.msra.mxu0 %v1169
        %1325 = vmatpush.msra.mxu0 %v1168
        %1326 = vmatpush.msra.mxu0 %v1167
        %1327 = vmatpush.msra.mxu0 %v1166
        %1328 = vmatpush.msra.mxu0 %v1165
        %1329 = vmatpush.msra.mxu0 %v1164
        %1330 = vmatpush.msra.mxu0 %v1163
        %1331 = vmatpush.msra.mxu0 %v1162
        %1332 = vmatpush.msra.mxu0 %v1161
        %1333 = vmatpush.msra.mxu0 %v1160
        %1334 = vmatmul.f32.gmra.mxu0 %v1155
        %v1335 = vpop.f32.mrf.mxu0
        %v1336 = vadd.f32 %v1313, %v1335
        %1337 = vmatmul.f32.gmra.mxu0 %v1158
        %v1338 = vpop.f32.mrf.mxu0
        %v1339 = vadd.f32 %v1316, %v1338
        %1340 = vdwg.mxu0
        %v1341 = vperm.slane %v1034, 0
        %v1342 = vadd.f32 %v727, %v1341
        %v1343 = vadd.f32 %v730, %v1341
        %1344 = vmatpush.xpose.msra.mxu0 0.0
        %1345 = vmatpush.xpose.msra.mxu0 0.0
        %1346 = vmatpush.xpose.msra.mxu0 0.0
        %1347 = vmatpush.xpose.msra.mxu0 0.0
        %1348 = vmatpush.xpose.msra.mxu0 0.0
        %1349 = vmatpush.xpose.msra.mxu0 0.0
        %1350 = vmatpush.xpose.msra.mxu0 0.0
        %1351 = vmatpush.xpose.msra.mxu0 0.0
        %1352 = vmatpush.xpose.msra.mxu0 0.0
        %1353 = vmatpush.xpose.msra.mxu0 0.0
        %1354 = vmatpush.xpose.msra.mxu0 0.0
        %1355 = vmatpush.xpose.msra.mxu0 0.0
        %1356 = vmatpush.xpose.msra.mxu0 0.0
        %1357 = vmatpush.xpose.msra.mxu0 0.0
        %1358 = vmatpush.xpose.msra.mxu0 %v822
        %1359 = vmatpush.xpose.msra.mxu0 %v819
        %1360 = vmatmul.f32.gmra.mxu0 %v1342
        %v1361 = vpop.f32.mrf.mxu0
        %v1362 = vadd.f32 0.0, %v1361
        %1363 = vmatmul.f32.gmra.mxu0 %v1343
        %v1364 = vpop.f32.mrf.mxu0
        %v1365 = vadd.f32 0.0, %v1364
        %1366 = vdwg.mxu0
        %v1367 = vsel %vm1082, %v1362, -inf
        %1368 = vmax.xlane.f32.xlu0 %v1367
        %v1369 = vpop.xlane.xlu0 %1368
        %v1370 = vsel %vm1082, %v1365, -inf
        %1371 = vmax.xlane.f32.xlu0 %v1370
        %v1372 = vpop.xlane.xlu0 %1371
        %v1373 = vsub.f32 %v1362, %v1369
        %v1374 = vsub.f32 %v1365, %v1372
        %v1375 = vmul.f32 %v1373, 1.442695
        %v1376 = vpow.pop %v1375
        %v1377 = vmul.f32 %v1374, 1.442695
        %v1378 = vpow.pop %v1377
        %v1379 = vsel %vm1082, %v1376, 0.0
        %1380 = vadd.xlane.f32.xlu0 %v1379
        %v1381 = vpop.xlane.xlu0 %1380
        %v1382 = vsel %vm1082, %v1378, 0.0
        %1383 = vadd.xlane.f32.xlu0 %v1382
        %v1384 = vpop.xlane.xlu0 %1383
        %v1385 = vrcp.pop %v1381
        %v1386 = vmul.f32 %v1381, %v1385
        %v1387 = vsub.f32 1.0, %v1386
        %v1388 = vmul.f32 %v1385, %v1387
        %v1389 = vadd.f32 %v1385, %v1388
        %vm1390 = vweird.f32 %v1381
        %vm1391 = vweird.f32 %v1385
        %vm1392 = vmor %vm1390, %vm1391
        %v1393 = vsel %vm1392, %v1385, %v1389
        %v1394 = vand.u32 2147483647, %v1381
        %vm1395 = vcmp.eq.f32.partialorder %v1394, 8.507059e+37
        %v1396 = vand.u32 %v1381, 2147483648
        %v1397 = vor.u32 1.1754944e-38, %v1396
        %v1398 = vsel %vm1395, %v1397, %v1393
        %v1399 = vmul.f32 %v1376, %v1398
        %v1400 = vrcp.pop %v1384
        %v1401 = vmul.f32 %v1384, %v1400
        %v1402 = vsub.f32 1.0, %v1401
        %v1403 = vmul.f32 %v1400, %v1402
        %v1404 = vadd.f32 %v1400, %v1403
        %vm1405 = vweird.f32 %v1384
        %vm1406 = vweird.f32 %v1400
        %vm1407 = vmor %vm1405, %vm1406
        %v1408 = vsel %vm1407, %v1400, %v1404
        %v1409 = vand.u32 2147483647, %v1384
        %vm1410 = vcmp.eq.f32.partialorder %v1409, 8.507059e+37
        %v1411 = vand.u32 %v1384, 2147483648
        %v1412 = vor.u32 1.1754944e-38, %v1411
        %v1413 = vsel %vm1410, %v1412, %v1408
        %v1414 = vmul.f32 %v1378, %v1413
        %v1416 = vsel %vm1082, %v1399, 0
        %v1419 = vsel %vm1082, %v1414, 0
        %1421 = vmatpush.msra.mxu0 0.0
        %1422 = vmatpush.msra.mxu0 0.0
        %1423 = vmatpush.msra.mxu0 0.0
        %1424 = vmatpush.msra.mxu0 0.0
        %1425 = vmatpush.msra.mxu0 0.0
        %1426 = vmatpush.msra.mxu0 0.0
        %1427 = vmatpush.msra.mxu0 0.0
        %1428 = vmatpush.msra.mxu0 0.0
        %1429 = vmatpush.msra.mxu0 0.0
        %1430 = vmatpush.msra.mxu0 0.0
        %1431 = vmatpush.msra.mxu0 0.0
        %1432 = vmatpush.msra.mxu0 0.0
        %1433 = vmatpush.msra.mxu0 0.0
        %1434 = vmatpush.msra.mxu0 0.0
        %1435 = vmatpush.msra.mxu0 %v914
        %1436 = vmatpush.msra.mxu0 %v911
        %1437 = vmatmul.f32.gmra.mxu0 %v1416
        %v1438 = vpop.f32.mrf.mxu0
        %v1439 = vadd.f32 0.0, %v1438
        %1440 = vmatmul.f32.gmra.mxu0 %v1419
        %v1441 = vpop.f32.mrf.mxu0
        %v1442 = vadd.f32 0.0, %v1441
        %1443 = vdwg.mxu0
        %v1444 = vld [vmem:[#allocation10 + $0x100] sm:$0xff]
        %v1445 = vld [vmem:[#allocation10 + $0x108] sm:$0xff]
        %v1446 = vld [vmem:[#allocation10 + $0x110] sm:$0xff]
        %v1447 = vld [vmem:[#allocation10 + $0x118] sm:$0xff]
        %v1448 = vld [vmem:[#allocation10 + $0x120] sm:$0xff]
        %v1449 = vld [vmem:[#allocation10 + $0x128] sm:$0xff]
        %v1450 = vld [vmem:[#allocation10 + $0x130] sm:$0xff]
        %v1451 = vld [vmem:[#allocation10 + $0x138] sm:$0xff]
        %v1452 = vld [vmem:[#allocation10 + $0x140] sm:$0xff]
        %v1453 = vld [vmem:[#allocation10 + $0x148] sm:$0xff]
        %v1454 = vld [vmem:[#allocation10 + $0x150] sm:$0xff]
        %v1455 = vld [vmem:[#allocation10 + $0x158] sm:$0xff]
        %v1456 = vld [vmem:[#allocation10 + $0x160] sm:$0xff]
        %v1457 = vld [vmem:[#allocation10 + $0x168] sm:$0xff]
        %v1458 = vld [vmem:[#allocation10 + $0x170] sm:$0xff]
        %v1459 = vld [vmem:[#allocation10 + $0x178] sm:$0xff]
        %1460 = vmatpush.msra.mxu0 %v1459
        %1461 = vmatpush.msra.mxu0 %v1458
        %1462 = vmatpush.msra.mxu0 %v1457
        %1463 = vmatpush.msra.mxu0 %v1456
        %1464 = vmatpush.msra.mxu0 %v1455
        %1465 = vmatpush.msra.mxu0 %v1454
        %1466 = vmatpush.msra.mxu0 %v1453
        %1467 = vmatpush.msra.mxu0 %v1452
        %1468 = vmatpush.msra.mxu0 %v1451
        %1469 = vmatpush.msra.mxu0 %v1450
        %1470 = vmatpush.msra.mxu0 %v1449
        %1471 = vmatpush.msra.mxu0 %v1448
        %1472 = vmatpush.msra.mxu0 %v1447
        %1473 = vmatpush.msra.mxu0 %v1446
        %1474 = vmatpush.msra.mxu0 %v1445
        %1475 = vmatpush.msra.mxu0 %v1444
        %1476 = vmatmul.f32.gmra.mxu0 %v1439
        %v1477 = vpop.f32.mrf.mxu0
        %v1478 = vadd.f32 0.0, %v1477
        %1479 = vmatmul.f32.gmra.mxu0 %v1442
        %v1480 = vpop.f32.mrf.mxu0
        %v1481 = vadd.f32 0.0, %v1480
        %1482 = vdwg.mxu0
        %v1483 = vadd.f32 %v1336, %v1478
        %v1484 = vadd.f32 %v1339, %v1481
        %v1485 = vperm.slane %v1054, 0
        %v1486 = vadd.f32 %v750, %v1485
        %v1487 = vadd.f32 %v753, %v1485
        %1488 = vmatpush.xpose.msra.mxu0 0.0
        %1489 = vmatpush.xpose.msra.mxu0 0.0
        %1490 = vmatpush.xpose.msra.mxu0 0.0
        %1491 = vmatpush.xpose.msra.mxu0 0.0
        %1492 = vmatpush.xpose.msra.mxu0 0.0
        %1493 = vmatpush.xpose.msra.mxu0 0.0
        %1494 = vmatpush.xpose.msra.mxu0 0.0
        %1495 = vmatpush.xpose.msra.mxu0 0.0
        %1496 = vmatpush.xpose.msra.mxu0 0.0
        %1497 = vmatpush.xpose.msra.mxu0 0.0
        %1498 = vmatpush.xpose.msra.mxu0 0.0
        %1499 = vmatpush.xpose.msra.mxu0 0.0
        %1500 = vmatpush.xpose.msra.mxu0 0.0
        %1501 = vmatpush.xpose.msra.mxu0 0.0
        %1502 = vmatpush.xpose.msra.mxu0 %v845
        %1503 = vmatpush.xpose.msra.mxu0 %v842
        %1504 = vmatmul.f32.gmra.mxu0 %v1486
        %v1505 = vpop.f32.mrf.mxu0
        %v1506 = vadd.f32 0.0, %v1505
        %1507 = vmatmul.f32.gmra.mxu0 %v1487
        %v1508 = vpop.f32.mrf.mxu0
        %v1509 = vadd.f32 0.0, %v1508
        %1510 = vdwg.mxu0
        %v1511 = vsel %vm1082, %v1506, -inf
        %1512 = vmax.xlane.f32.xlu0 %v1511
        %v1513 = vpop.xlane.xlu0 %1512
        %v1514 = vsel %vm1082, %v1509, -inf
        %1515 = vmax.xlane.f32.xlu0 %v1514
        %v1516 = vpop.xlane.xlu0 %1515
        %v1517 = vsub.f32 %v1506, %v1513
        %v1518 = vsub.f32 %v1509, %v1516
        %v1519 = vmul.f32 %v1517, 1.442695
        %v1520 = vpow.pop %v1519
        %v1521 = vmul.f32 %v1518, 1.442695
        %v1522 = vpow.pop %v1521
        %v1523 = vsel %vm1082, %v1520, 0.0
        %1524 = vadd.xlane.f32.xlu0 %v1523
        %v1525 = vpop.xlane.xlu0 %1524
        %v1526 = vsel %vm1082, %v1522, 0.0
        %1527 = vadd.xlane.f32.xlu0 %v1526
        %v1528 = vpop.xlane.xlu0 %1527
        %v1529 = vrcp.pop %v1525
        %v1530 = vmul.f32 %v1525, %v1529
        %v1531 = vsub.f32 1.0, %v1530
        %v1532 = vmul.f32 %v1529, %v1531
        %v1533 = vadd.f32 %v1529, %v1532
        %vm1534 = vweird.f32 %v1525
        %vm1535 = vweird.f32 %v1529
        %vm1536 = vmor %vm1534, %vm1535
        %v1537 = vsel %vm1536, %v1529, %v1533
        %v1538 = vand.u32 2147483647, %v1525
        %vm1539 = vcmp.eq.f32.partialorder %v1538, 8.507059e+37
        %v1540 = vand.u32 %v1525, 2147483648
        %v1541 = vor.u32 1.1754944e-38, %v1540
        %v1542 = vsel %vm1539, %v1541, %v1537
        %v1543 = vmul.f32 %v1520, %v1542
        %v1544 = vrcp.pop %v1528
        %v1545 = vmul.f32 %v1528, %v1544
        %v1546 = vsub.f32 1.0, %v1545
        %v1547 = vmul.f32 %v1544, %v1546
        %v1548 = vadd.f32 %v1544, %v1547
        %vm1549 = vweird.f32 %v1528
        %vm1550 = vweird.f32 %v1544
        %vm1551 = vmor %vm1549, %vm1550
        %v1552 = vsel %vm1551, %v1544, %v1548
        %v1553 = vand.u32 2147483647, %v1528
        %vm1554 = vcmp.eq.f32.partialorder %v1553, 8.507059e+37
        %v1555 = vand.u32 %v1528, 2147483648
        %v1556 = vor.u32 1.1754944e-38, %v1555
        %v1557 = vsel %vm1554, %v1556, %v1552
        %v1558 = vmul.f32 %v1522, %v1557
        %v1560 = vsel %vm1082, %v1543, 0
        %v1563 = vsel %vm1082, %v1558, 0
        %1565 = vmatpush.msra.mxu0 0.0
        %1566 = vmatpush.msra.mxu0 0.0
        %1567 = vmatpush.msra.mxu0 0.0
        %1568 = vmatpush.msra.mxu0 0.0
        %1569 = vmatpush.msra.mxu0 0.0
        %1570 = vmatpush.msra.mxu0 0.0
        %1571 = vmatpush.msra.mxu0 0.0
        %1572 = vmatpush.msra.mxu0 0.0
        %1573 = vmatpush.msra.mxu0 0.0
        %1574 = vmatpush.msra.mxu0 0.0
        %1575 = vmatpush.msra.mxu0 0.0
        %1576 = vmatpush.msra.mxu0 0.0
        %1577 = vmatpush.msra.mxu0 0.0
        %1578 = vmatpush.msra.mxu0 0.0
        %1579 = vmatpush.msra.mxu0 %v937
        %1580 = vmatpush.msra.mxu0 %v934
        %1581 = vmatmul.f32.gmra.mxu0 %v1560
        %v1582 = vpop.f32.mrf.mxu0
        %v1583 = vadd.f32 0.0, %v1582
        %1584 = vmatmul.f32.gmra.mxu0 %v1563
        %v1585 = vpop.f32.mrf.mxu0
        %v1586 = vadd.f32 0.0, %v1585
        %1587 = vdwg.mxu0
        %v1588 = vld [vmem:[#allocation10 + $0x180] sm:$0xff]
        %v1589 = vld [vmem:[#allocation10 + $0x188] sm:$0xff]
        %v1590 = vld [vmem:[#allocation10 + $0x190] sm:$0xff]
        %v1591 = vld [vmem:[#allocation10 + $0x198] sm:$0xff]
        %v1592 = vld [vmem:[#allocation10 + $0x1a0] sm:$0xff]
        %v1593 = vld [vmem:[#allocation10 + $0x1a8] sm:$0xff]
        %v1594 = vld [vmem:[#allocation10 + $0x1b0] sm:$0xff]
        %v1595 = vld [vmem:[#allocation10 + $0x1b8] sm:$0xff]
        %v1596 = vld [vmem:[#allocation10 + $0x1c0] sm:$0xff]
        %v1597 = vld [vmem:[#allocation10 + $0x1c8] sm:$0xff]
        %v1598 = vld [vmem:[#allocation10 + $0x1d0] sm:$0xff]
        %v1599 = vld [vmem:[#allocation10 + $0x1d8] sm:$0xff]
        %v1600 = vld [vmem:[#allocation10 + $0x1e0] sm:$0xff]
        %v1601 = vld [vmem:[#allocation10 + $0x1e8] sm:$0xff]
        %v1602 = vld [vmem:[#allocation10 + $0x1f0] sm:$0xff]
        %v1603 = vld [vmem:[#allocation10 + $0x1f8] sm:$0xff]
        %1604 = vmatpush.msra.mxu0 %v1603
        %1605 = vmatpush.msra.mxu0 %v1602
        %1606 = vmatpush.msra.mxu0 %v1601
        %1607 = vmatpush.msra.mxu0 %v1600
        %1608 = vmatpush.msra.mxu0 %v1599
        %1609 = vmatpush.msra.mxu0 %v1598
        %1610 = vmatpush.msra.mxu0 %v1597
        %1611 = vmatpush.msra.mxu0 %v1596
        %1612 = vmatpush.msra.mxu0 %v1595
        %1613 = vmatpush.msra.mxu0 %v1594
        %1614 = vmatpush.msra.mxu0 %v1593
        %1615 = vmatpush.msra.mxu0 %v1592
        %1616 = vmatpush.msra.mxu0 %v1591
        %1617 = vmatpush.msra.mxu0 %v1590
        %1618 = vmatpush.msra.mxu0 %v1589
        %1619 = vmatpush.msra.mxu0 %v1588
        %1620 = vmatmul.f32.gmra.mxu0 %v1583
        %v1621 = vpop.f32.mrf.mxu0
        %v1622 = vadd.f32 0.0, %v1621
        %1623 = vmatmul.f32.gmra.mxu0 %v1586
        %v1624 = vpop.f32.mrf.mxu0
        %v1625 = vadd.f32 0.0, %v1624
        %1626 = vdwg.mxu0
        %v1627 = vadd.f32 %v1483, %v1622
        %v1628 = vadd.f32 %v1484, %v1625
        %v1629 = vld [vmem:[%s7] sm:$0x1]
        %v1631 = vperm.slane %v1629, 0
        %v1633 = vadd.f32 %v1627, %v1631
        %v1634 = vadd.f32 %v1628, %v1631
        %1635 = vst [vmem:[%s409] sm:$0xff] %v1633
        %1636 = vst [vmem:[%s409 + $0x8] sm:$0xff] %v1634
        %s1637 = sand.u32 %s215, 1
        %s1638 = scalar_lea.sflag [#allocation4], %s1637
        %s1639 = sand.u32 %s215, 1
        %s1640 = smul.addr %s1639, 16
        %s1641 = scalar_lea.vmem [#allocation11], %s1640
        // Predicated region
        $region73: #{tpu_custom_call.1} parent=51 // pred_check
          %p1642 = pneg %p225
        $region74: #{tpu_custom_call.1} parent=51 // pred_check_branch
          %1644 = sbr.rel (%p1642) target = $region76
        $region75: #{tpu_custom_call.1} parent=51 // pred_region
          %1646 = vsyncadd %s1638, 0
          %s1647 = smul.addr %s29, 2
          %s1648 = smul.addr %s1647, 8
          %s1649 = scalar_lea.hbm %s8, %s1648
          %s1650 = sshll.u32 %s1641, 4
          %s1651 = int_to_ptr.vmem [resolvable:$true] %s1650
          %s1652 = sshll.u32 %s1649, 4
          %s1653 = int_to_ptr.hbm [resolvable:$true] %s1652
          %1658 = dma.vmem_to_hbm [thread:$0]  %s1651, 256, %s1653, %s1638, 128, 128, 8
        $region76: #{tpu_custom_call.1} parent=51 // pred_fallthru
          _
      $region52: #{tpu_custom_call.1} parent=5 // pred_fallthru
        _
      %p1659 = scmp.le.s32.totalorder 2, %s24
      // Predicated region
      $region77: #{tpu_custom_call.1} parent=5 // pred_check
        %p1660 = pneg %p1659
      $region78: #{tpu_custom_call.1} parent=5 // pred_check_branch
        %1662 = sbr.rel (%p1660) target = $region80
      $region79: #{tpu_custom_call.1} parent=5 // pred_region
        %s1663 = ssub.s32 %s24, 2
        // Predicated region
        $region81: #{tpu_custom_call.1} parent=79 // pred_check
          %p1664 = pneg %p231
        $region82: #{tpu_custom_call.1} parent=79 // pred_check_branch
          %1666 = sbr.rel (%p1664) target = $region84
        $region83: #{tpu_custom_call.1} parent=79 // pred_region
          %s1667 = sand.u32 %s216, 1
          %s1668 = scalar_lea.sflag [#allocation4], %s1667
          %s1669 = sand.u32 %s216, 1
          %s1670 = smul.addr %s1669, 16
          %s1671 = scalar_lea.vmem [#allocation11], %s1670
          %1673 = dma.done %s1668, 256
        $region84: #{tpu_custom_call.1} parent=79 // pred_fallthru
          _
      $region80: #{tpu_custom_call.1} parent=5 // pred_fallthru
        _
    $region6: #{tpu_custom_call.1} parent=1 // loop_footer
      %s28 = sadd.s32 1, %s24
    $region7: #{tpu_custom_call.1} parent=1 // loop_footer_branch
      %23 = sbr.rel target = $region3
    $region8: #{tpu_custom_call.1} parent=1 // loop_exit
      _
    %1674 = vsyncpa [#allocation3], 1
    %s1675 = scalar_lea.sflag [#allocation3], 1
    %1676 = vsyncpa %s1675, 1
    %1677 = vsyncpa [#allocation6], 1
    %s1678 = scalar_lea.sflag [#allocation6], 1
    %1679 = vsyncpa %s1678, 1
    %1680 = vsyncpa [#allocation9], 1
    %1681 = vsyncpa [#allocation4], 1
    %s1682 = scalar_lea.sflag [#allocation4], 1
    %1683 = vsyncpa %s1682, 1

</llo_original>
